<compile_context>
chip_gen: v7x
topology: tpu7x:2x2x1
jax: 0.10.0
libtpu: 0.0.40
codegen_flags: <defaults>
</compile_context>

<pallas_src>
from functools import partial

import numpy as np
import jax
import jax.numpy as jnp
from jax.experimental import pallas as pl
from jax.experimental.pallas import tpu as pltpu


# ----------------------------------------------------------------------------
# Model config (small, consistent with the module; num_hist must be 10/20/50)
# ----------------------------------------------------------------------------
NUM_PROP = 8
NUM_SCAN = 16
NUM_PRIV_EXPLICIT = 4
NUM_PRIV_LATENT = 6
NUM_HIST = 10
NUM_ACTIONS = 4
SCAN_ENCODER_DIMS = [32, 32, 32]
ACTOR_HIDDEN_DIMS = [32, 32, 32]
CRITIC_HIDDEN_DIMS = [32, 32, 32]
PRIV_ENCODER_DIMS = [16, 8]
PRIV_OUT = PRIV_ENCODER_DIMS[-1]
CHANNEL = 10                                   # StateHistoryEncoder channel_size
NUM_CRITIC_OBS = NUM_PROP + NUM_SCAN + NUM_PRIV_EXPLICIT + NUM_PRIV_LATENT      # 34
OBS_DIM = NUM_CRITIC_OBS + NUM_HIST * NUM_PROP                                   # 114
PE_OFF = NUM_PROP + NUM_SCAN                   # priv_explicit offset  (24)
PL_OFF = PE_OFF + NUM_PRIV_EXPLICIT            # priv_latent  offset  (28)
HIST_OFF = OBS_DIM - NUM_HIST * NUM_PROP       # history      offset  (34)

# Conv geometry for tsteps=10: Conv1d(30,20,k4,s2) -> L=4 ; Conv1d(20,10,k2,s1) -> L=3
C1_K, C1_S, L1OUT = 4, 2, 4
C2_K, C2_S, L2OUT = 2, 1, 3
C_IN1, C_OUT1 = 3 * CHANNEL, 2 * CHANNEL       # 30, 20
C_IN2, C_OUT2 = 2 * CHANNEL, CHANNEL           # 20, 10

OUT_W = 8                                      # small padded output width (4 / 1 valid cols)
BB_IN_PARTS = (NUM_PROP, SCAN_ENCODER_DIMS[-1], NUM_PRIV_EXPLICIT, PRIV_OUT)    # 52 total


def _round8(n):
    return -(-n // 8) * 8


# ----------------------------------------------------------------------------
# Static parameter layout (computed from config only; values filled at pack time)
# Each variant's parameters live in 1-2 packed VMEM buffers; the kernel unpacks
# them with static row/column slices.
# ----------------------------------------------------------------------------
_SCAN_SHAPES = [
    ("scan_w0", (NUM_SCAN, SCAN_ENCODER_DIMS[0])), ("scan_b0", (1, SCAN_ENCODER_DIMS[0])),
    ("scan_w1", (SCAN_ENCODER_DIMS[0], SCAN_ENCODER_DIMS[1])), ("scan_b1", (1, SCAN_ENCODER_DIMS[1])),
    ("scan_w2", (SCAN_ENCODER_DIMS[1], SCAN_ENCODER_DIMS[2])), ("scan_b2", (1, SCAN_ENCODER_DIMS[2])),
]
_PRIV_SHAPES = [
    ("priv_w0", (NUM_PRIV_LATENT, PRIV_ENCODER_DIMS[0])), ("priv_b0", (1, PRIV_ENCODER_DIMS[0])),
    ("priv_w1", (PRIV_ENCODER_DIMS[0], PRIV_ENCODER_DIMS[1])), ("priv_b1", (1, PRIV_ENCODER_DIMS[1])),
]
_HIST_SHAPES = [
    ("hist_bd_w", (NUM_HIST * NUM_PROP, NUM_HIST * C_IN1)), ("hist_bd_b", (1, NUM_HIST * C_IN1)),
    ("hist_t1_w", (NUM_HIST * C_IN1, L1OUT * C_OUT1)), ("hist_t1_b", (1, L1OUT * C_OUT1)),
    ("hist_t2_w", (L1OUT * C_OUT1, L2OUT * C_OUT2)), ("hist_t2_b", (1, L2OUT * C_OUT2)),
    ("hist_ho_w", (L2OUT * C_OUT2, PRIV_OUT)), ("hist_ho_b", (1, PRIV_OUT)),
]
_BB_SHAPES = [
    ("bb0_prop", (NUM_PROP, ACTOR_HIDDEN_DIMS[0])),
    ("bb0_scan", (SCAN_ENCODER_DIMS[-1], ACTOR_HIDDEN_DIMS[0])),
    ("bb0_pe",   (NUM_PRIV_EXPLICIT, ACTOR_HIDDEN_DIMS[0])),
    ("bb0_lat",  (PRIV_OUT, ACTOR_HIDDEN_DIMS[0])),
    ("bb0_b",    (1, ACTOR_HIDDEN_DIMS[0])),
    ("bb1_w", (ACTOR_HIDDEN_DIMS[0], ACTOR_HIDDEN_DIMS[1])), ("bb1_b", (1, ACTOR_HIDDEN_DIMS[1])),
    ("bb2_w", (ACTOR_HIDDEN_DIMS[1], ACTOR_HIDDEN_DIMS[2])), ("bb2_b", (1, ACTOR_HIDDEN_DIMS[2])),
    ("bb3_w", (ACTOR_HIDDEN_DIMS[2], OUT_W)), ("bb3_b", (1, OUT_W)),
]
_CR_SHAPES = [
    ("cr0_w", (NUM_CRITIC_OBS, CRITIC_HIDDEN_DIMS[0])), ("cr0_b", (1, CRITIC_HIDDEN_DIMS[0])),
    ("cr1_w", (CRITIC_HIDDEN_DIMS[0], CRITIC_HIDDEN_DIMS[1])), ("cr1_b", (1, CRITIC_HIDDEN_DIMS[1])),
    ("cr2_w", (CRITIC_HIDDEN_DIMS[1], CRITIC_HIDDEN_DIMS[2])), ("cr2_b", (1, CRITIC_HIDDEN_DIMS[2])),
    ("cr3_w", (CRITIC_HIDDEN_DIMS[2], OUT_W)), ("cr3_b", (1, OUT_W)),
]

_ACTOR_PRIV_SHAPES = _SCAN_SHAPES + _PRIV_SHAPES + _BB_SHAPES
_ACTOR_HIST_SHAPES = _SCAN_SHAPES + _HIST_SHAPES + _BB_SHAPES
_CRITIC_SHAPES = list(_CR_SHAPES)


def _build_layout(shapes, wide_threshold=128):
    """Group params into a 'narrow' and (if needed) 'wide' packed buffer."""
    narrow = [(n, s) for n, s in shapes if s[1] <= wide_threshold]
    wide = [(n, s) for n, s in shapes if s[1] > wide_threshold]
    layout, buf_shapes = {}, []
    for group in (narrow, wide):
        if not group:
            continue
        width = max(s[1] for _, s in group)
        bi = len(buf_shapes)
        row = 0
        for name, s in group:
            layout[name] = (bi, row, s)
            row += _round8(s[0])           # 8-row aligned bands (sublane aligned slices)
        buf_shapes.append((row, width))
    return layout, tuple(buf_shapes)


_LAYOUT_PRIV, _BUFSH_PRIV = _build_layout(_ACTOR_PRIV_SHAPES)
_LAYOUT_HIST, _BUFSH_HIST = _build_layout(_ACTOR_HIST_SHAPES)
_LAYOUT_CR, _BUFSH_CR = _build_layout(_CRITIC_SHAPES)


def _cost_consts(shapes, buf_shapes):
    macs = sum(r * c for _, (r, c) in shapes if r > 1)      # per-row MACs (zeros included)
    trans = sum(c for _, (r, c) in shapes if r == 1)        # advisory transcendental count
    pbytes = sum(r * w * 4 for r, w in buf_shapes)
    return macs, trans, pbytes


_COSTS = {
    "actor_priv": _cost_consts(_ACTOR_PRIV_SHAPES, _BUFSH_PRIV),
    "actor_hist": _cost_consts(_ACTOR_HIST_SHAPES, _BUFSH_HIST),
    "critic": _cost_consts(_CRITIC_SHAPES, _BUFSH_CR),
}


# ----------------------------------------------------------------------------
# In-kernel helpers
# ----------------------------------------------------------------------------
def _elu(h):
    # Exact ELU(alpha=1); exp arg clamped to <=0 so it never overflows.
    return jnp.maximum(h, 0.0) + jnp.exp(jnp.minimum(h, 0.0)) - 1.0


def _mm(a, b):
    return jnp.dot(a, b, preferred_element_type=jnp.float32)


def _getter(bufs, layout):
    def get(name):
        bi, r0, (r, c) = layout[name]
        return bufs[bi][r0:r0 + r, 0:c]          # static slice of VMEM-resident buffer
    return get


# ----------------------------------------------------------------------------
# Fused actor kernel: scan encoder + (priv | history) encoder + backbone.
# refs = (obs_ref, *param_buf_refs, out_ref).  layout / hist_encoding are static.
# ----------------------------------------------------------------------------
def _actor_kernel(*refs, layout, hist_encoding):
    obs_ref, out_ref = refs[0], refs[-1]
    W = _getter(refs[1:-1], layout)

    obs = obs_ref[...]
    prop = obs[:, :NUM_PROP]
    scan = obs[:, NUM_PROP:NUM_PROP + NUM_SCAN]
    priv_expl = obs[:, PE_OFF:PE_OFF + NUM_PRIV_EXPLICIT]

    # scan encoder: Linear+ELU, Linear+ELU, Linear+Tanh
    h = _elu(_mm(scan, W("scan_w0")) + W("scan_b0"))
    h = _elu(_mm(h, W("scan_w1")) + W("scan_b1"))
    scan_latent = jnp.tanh(_mm(h, W("scan_w2")) + W("scan_b2"))

    if hist_encoding:
        # StateHistoryEncoder as 4 wide matmuls over pre-packed block-diagonal /
        # block-Toeplitz weights (per-timestep Linear, the two Conv1d layers and
        # the channel-major Flatten + linear_output are all folded in at pack time).
        hist = obs[:, HIST_OFF:HIST_OFF + NUM_HIST * NUM_PROP]          # (TB, 80)
        proj = _elu(_mm(hist, W("hist_bd_w")) + W("hist_bd_b"))         # (TB, 300)
        y1 = _elu(_mm(proj, W("hist_t1_w")) + W("hist_t1_b"))           # (TB, 80)
        y2 = _elu(_mm(y1, W("hist_t2_w")) + W("hist_t2_b"))             # (TB, 30)
        latent = _elu(_mm(y2, W("hist_ho_w")) + W("hist_ho_b"))         # (TB, 8)
    else:
        priv = obs[:, PL_OFF:PL_OFF + NUM_PRIV_LATENT]
        latent = _elu(_mm(priv, W("priv_w0")) + W("priv_b0"))
        latent = _elu(_mm(latent, W("priv_w1")) + W("priv_b1"))

    # Backbone.  First layer as 4 split matmuls (row-bands of the original W0)
    # so there is no lane-crossing concatenate of the backbone input.
    h = _elu(_mm(prop, W("bb0_prop")) + _mm(scan_latent, W("bb0_scan"))
             + _mm(priv_expl, W("bb0_pe")) + _mm(latent, W("bb0_lat")) + W("bb0_b"))
    h = _elu(_mm(h, W("bb1_w")) + W("bb1_b"))
    h = _elu(_mm(h, W("bb2_w")) + W("bb2_b"))
    out_ref[...] = _mm(h, W("bb3_w")) + W("bb3_b")       # (TB, OUT_W) store, 4 valid cols


# ----------------------------------------------------------------------------
# Fused critic kernel: 4-layer MLP, last layer padded to OUT_W columns.
# ----------------------------------------------------------------------------
def _critic_kernel(*refs, layout):
    x_ref, out_ref = refs[0], refs[-1]
    W = _getter(refs[1:-1], layout)
    h = x_ref[...]
    h = _elu(_mm(h, W("cr0_w")) + W("cr0_b"))
    h = _elu(_mm(h, W("cr1_w")) + W("cr1_b"))
    h = _elu(_mm(h, W("cr2_w")) + W("cr2_b"))
    out_ref[...] = _mm(h, W("cr3_w")) + W("cr3_b")        # (TB, OUT_W) store, 1 valid col


# ----------------------------------------------------------------------------
# Wrapper: one pallas_call, batch-tiled grid, weights resident, NO input padding.
# ----------------------------------------------------------------------------
def _batch_tile(B):
    # Up to 1024 rows/tile; aim for >=2 grid steps so v7x's two TensorCores
    # both get work under dimension_semantics=("parallel",).
    tb = _round8((B + 1) // 2)
    return int(max(8, min(1024, tb)))


def _fused_call(kernel, x, bufs, out_valid_cols, cost_consts):
    B, F = x.shape
    TB = _batch_tile(B)
    macs, trans, pbytes = cost_consts
    cost = pl.CostEstimate(
        flops=int(2 * macs * B),
        transcendentals=int(trans * B),
        bytes_accessed=int(B * (F + OUT_W) * 4 + pbytes),
    )

    # Input / output block widths equal the full (unpadded) array widths — allowed,
    # avoids any jnp.pad HBM rewrite.  Ragged last batch block is handled by Pallas;
    # its garbage rows are row-independent and never read back (out is exactly (B, OUT_W)).
    in_specs = [pl.BlockSpec((TB, F), lambda i: (i, 0))]
    in_specs += [pl.BlockSpec(b.shape, lambda i: (0, 0)) for b in bufs]

    out = pl.pallas_call(
        kernel,
        out_shape=jax.ShapeDtypeStruct((B, OUT_W), jnp.float32),
        grid=(pl.cdiv(B, TB),),
        in_specs=in_specs,
        out_specs=pl.BlockSpec((TB, OUT_W), lambda i: (i, 0)),
        compiler_params=pltpu.CompilerParams(
            dimension_semantics=("parallel",),       # megacore sharding on v7x
        ),
        cost_estimate=cost,
    )(x, *bufs)
    return out[:, :out_valid_cols]


@partial(jax.jit, static_argnames=("hist_encoding",))
def actor_forward(obs, kernel_params, hist_encoding):
    if hist_encoding:
        bufs, layout, cost = kernel_params["actor_hist"], _LAYOUT_HIST, _COSTS["actor_hist"]
    else:
        bufs, layout, cost = kernel_params["actor_priv"], _LAYOUT_PRIV, _COSTS["actor_priv"]
    kernel = partial(_actor_kernel, layout=layout, hist_encoding=hist_encoding)
    return _fused_call(kernel, obs, bufs, NUM_ACTIONS, cost)


@jax.jit
def critic_forward(critic_obs, kernel_params):
    kernel = partial(_critic_kernel, layout=_LAYOUT_CR)
    return _fused_call(kernel, critic_obs, kernel_params["critic"], 1, _COSTS["critic"])

# TODO(synk): optional further fusion — critic_obs is the first NUM_CRITIC_OBS columns
# of obs, so actor mean + value could share one pallas_call when both are needed.


# ----------------------------------------------------------------------------
# Parameter construction (PyTorch layouts) + one-time packing for the kernels
# ----------------------------------------------------------------------------
def init_linear(key, fan_in, fan_out):
    kw, kb = jax.random.split(key)
    bound = 1.0 / np.sqrt(fan_in)
    w = jax.random.uniform(kw, (fan_in, fan_out), jnp.float32, -bound, bound)
    b = jax.random.uniform(kb, (1, fan_out), jnp.float32, -bound, bound)
    return w, b


def init_conv(key, c_in, c_out, k):
    kw, kb = jax.random.split(key)
    bound = 1.0 / np.sqrt(c_in * k)
    w = jax.random.uniform(kw, (c_out, c_in, k), jnp.float32, -bound, bound)  # torch layout
    b = jax.random.uniform(kb, (1, c_out), jnp.float32, -bound, bound)
    return w, b


def build_params(key):
    keys = iter(jax.random.split(key, 24))
    P = {}
    dims = [NUM_SCAN] + SCAN_ENCODER_DIMS
    P["scan"] = [init_linear(next(keys), dims[i], dims[i + 1]) for i in range(len(dims) - 1)]
    dims = [NUM_PRIV_LATENT] + PRIV_ENCODER_DIMS
    P["priv"] = [init_linear(next(keys), dims[i], dims[i + 1]) for i in range(len(dims) - 1)]
    P["hist_enc"] = init_linear(next(keys), NUM_PROP, 3 * CHANNEL)
    P["hist_conv1"] = init_conv(next(keys), 3 * CHANNEL, 2 * CHANNEL, C1_K)
    P["hist_conv2"] = init_conv(next(keys), 2 * CHANNEL, CHANNEL, C2_K)
    P["hist_out"] = init_linear(next(keys), CHANNEL * L2OUT, PRIV_OUT)
    bb_in = sum(BB_IN_PARTS)
    dims = [bb_in] + ACTOR_HIDDEN_DIMS + [NUM_ACTIONS]
    P["backbone"] = [init_linear(next(keys), dims[i], dims[i + 1]) for i in range(len(dims) - 1)]
    dims = [NUM_CRITIC_OBS] + CRITIC_HIDDEN_DIMS + [1]
    P["critic"] = [init_linear(next(keys), dims[i], dims[i + 1]) for i in range(len(dims) - 1)]
    P["std"] = jnp.ones((NUM_ACTIONS,), jnp.float32)   # unused in deterministic forward
    return P


def _conv_flat(w):
    # (C_out, C_in, K) torch -> (K*C_in, C_out) with row index k*C_in + ic
    w = np.asarray(w, np.float32)
    co, ci, k = w.shape
    return np.transpose(w, (2, 1, 0)).reshape(k * ci, co)


def _block_diag_encoder(enc_w, enc_b, T):
    # 10 copies of the per-timestep Linear along the diagonal -> one (80,300) matmul.
    enc_w = np.asarray(enc_w, np.float32)
    p, c = enc_w.shape
    W = np.zeros((T * p, T * c), np.float32)
    for t in range(T):
        W[t * p:(t + 1) * p, t * c:(t + 1) * c] = enc_w
    return W, np.tile(np.asarray(enc_b, np.float32), (1, T))


def _block_toeplitz(conv_w, conv_b, stride, L_in, L_out):
    # Conv1d over the timestep axis -> banded (L_in*Cin, L_out*Cout) matmul.
    conv_w = np.asarray(conv_w, np.float32)
    co, ci, k = conv_w.shape
    flat = _conv_flat(conv_w)                             # (K*Cin, Cout), rows k*Cin+ic
    W = np.zeros((L_in * ci, L_out * co), np.float32)
    for pos in range(L_out):
        r0 = pos * stride * ci
        W[r0:r0 + k * ci, pos * co:(pos + 1) * co] = flat
    return W, np.tile(np.asarray(conv_b, np.float32), (1, L_out))


def _hist_out_perm(w):
    # torch Flatten row index c*L2OUT + p  ->  kernel row index p*CHANNEL + c
    idx = np.array([c * L2OUT + p for p in range(L2OUT) for c in range(CHANNEL)], np.int64)
    return np.asarray(w, np.float32)[idx, :]


def _fill(layout, buf_shapes, values):
    bufs = [np.zeros(s, np.float32) for s in buf_shapes]
    for name, arr in values.items():
        bi, r0, (r, c) = layout[name]
        a = np.asarray(arr, np.float32)
        assert a.shape[0] <= r and a.shape[1] <= c, name
        bufs[bi][r0:r0 + a.shape[0], :a.shape[1]] = a      # rest stays zero (output padding)
    return tuple(jnp.asarray(b) for b in bufs)


def pack_kernel_params(P):
    # scan encoder
    vals_scan = {}
    for i, (w, b) in enumerate(P["scan"]):
        vals_scan[f"scan_w{i}"] = w
        vals_scan[f"scan_b{i}"] = b
    # priv encoder
    vals_priv = {}
    for i, (w, b) in enumerate(P["priv"]):
        vals_priv[f"priv_w{i}"] = w
        vals_priv[f"priv_b{i}"] = b
    # history encoder -> block-diag / block-Toeplitz packing (one time, zero runtime cost)
    bd_w, bd_b = _block_diag_encoder(P["hist_enc"][0], P["hist_enc"][1], NUM_HIST)
    t1_w, t1_b = _block_toeplitz(P["hist_conv1"][0], P["hist_conv1"][1], C1_S, NUM_HIST, L1OUT)
    t2_w, t2_b = _block_toeplitz(P["hist_conv2"][0], P["hist_conv2"][1], C2_S, L1OUT, L2OUT)
    vals_hist = {
        "hist_bd_w": bd_w, "hist_bd_b": bd_b,
        "hist_t1_w": t1_w, "hist_t1_b": t1_b,
        "hist_t2_w": t2_w, "hist_t2_b": t2_b,
        "hist_ho_w": _hist_out_perm(P["hist_out"][0]), "hist_ho_b": P["hist_out"][1],
    }
    # backbone: first layer split into row bands (no in-kernel concat); last layer padded to OUT_W
    bb = P["backbone"]
    w0 = np.asarray(bb[0][0], np.float32)
    vals_bb, off = {}, 0
    for name, width in zip(("bb0_prop", "bb0_scan", "bb0_pe", "bb0_lat"), BB_IN_PARTS):
        vals_bb[name] = w0[off:off + width, :]
        off += width
    vals_bb["bb0_b"] = bb[0][1]
    vals_bb["bb1_w"], vals_bb["bb1_b"] = bb[1]
    vals_bb["bb2_w"], vals_bb["bb2_b"] = bb[2]
    vals_bb["bb3_w"], vals_bb["bb3_b"] = bb[3]            # zero-padded to OUT_W by _fill
    # critic
    cr = P["critic"]
    vals_cr = {}
    for i, (w, b) in enumerate(cr):
        vals_cr[f"cr{i}_w"] = w
        vals_cr[f"cr{i}_b"] = b                           # last layer zero-padded to OUT_W

    return {
        "actor_priv": _fill(_LAYOUT_PRIV, _BUFSH_PRIV, {**vals_scan, **vals_priv, **vals_bb}),
        "actor_hist": _fill(_LAYOUT_HIST, _BUFSH_HIST, {**vals_scan, **vals_hist, **vals_bb}),
        "critic": _fill(_LAYOUT_CR, _BUFSH_CR, vals_cr),
    }


# ----------------------------------------------------------------------------
# Pure-JAX reference (PyTorch semantics, torch-layout weights) for verification
# ----------------------------------------------------------------------------
def _ref_mlp(x, layers, acts):
    h = x
    for (w, b), a in zip(layers, acts):
        h = h @ w + b
        if a == "elu":
            h = _elu(h)
        elif a == "tanh":
            h = jnp.tanh(h)
    return h


def _ref_conv1d(x, w, b, stride):
    # x: (B, Cin, L); w: (Cout, Cin, K) torch; b: (1, Cout)
    _, _, L = x.shape
    K = w.shape[2]
    Lout = (L - K) // stride + 1
    outs = [jnp.einsum("bck,ock->bo", x[:, :, p * stride:p * stride + K], w) + b
            for p in range(Lout)]
    return jnp.stack(outs, axis=2)                       # (B, Cout, Lout)


def ref_actor_forward(obs, P, hist_encoding):
    prop = obs[:, :NUM_PROP]
    scan = obs[:, NUM_PROP:NUM_PROP + NUM_SCAN]
    priv_expl = obs[:, PE_OFF:PE_OFF + NUM_PRIV_EXPLICIT]
    scan_latent = _ref_mlp(scan, P["scan"], ["elu", "elu", "tanh"])
    if hist_encoding:
        hist = obs[:, HIST_OFF:].reshape(-1, NUM_HIST, NUM_PROP)
        B = hist.shape[0]
        proj = _ref_mlp(hist.reshape(B * NUM_HIST, NUM_PROP), [P["hist_enc"]], ["elu"])
        x = proj.reshape(B, NUM_HIST, 3 * CHANNEL).transpose(0, 2, 1)          # NCL
        x = _elu(_ref_conv1d(x, P["hist_conv1"][0], P["hist_conv1"][1], C1_S))
        x = _elu(_ref_conv1d(x, P["hist_conv2"][0], P["hist_conv2"][1], C2_S))
        flat = x.reshape(B, CHANNEL * L2OUT)              # torch Flatten (channel-major)
        latent = _ref_mlp(flat, [P["hist_out"]], ["elu"])
    else:
        priv = obs[:, PL_OFF:PL_OFF + NUM_PRIV_LATENT]
        latent = _ref_mlp(priv, P["priv"], ["elu", "elu"])
    backbone_in = jnp.concatenate([prop, scan_latent, priv_expl, latent], axis=1)
    return _ref_mlp(backbone_in, P["backbone"], ["elu", "elu", "elu", "none"])


def ref_critic_forward(critic_obs, P):
    return _ref_mlp(critic_obs, P["critic"], ["elu", "elu", "elu", "none"])


# ----------------------------------------------------------------------------
if __name__ == "__main__":
    key = jax.random.PRNGKey(0)
    kp, ko, kc = jax.random.split(key, 3)

    P = build_params(kp)
    KP = pack_kernel_params(P)

    B = 2
    obs = jax.random.normal(ko, (B, OBS_DIM), jnp.float32)
    critic_obs = jax.random.normal(kc, (B, NUM_CRITIC_OBS), jnp.float32)

    # actor: priv-encoder path (hist_encoding=False)
    mean_priv = jax.block_until_ready(actor_forward(obs, KP, hist_encoding=False))
    # actor: history-encoder path (hist_encoding=True)
    mean_hist = jax.block_until_ready(actor_forward(obs, KP, hist_encoding=True))
    # critic value
    value = jax.block_until_ready(critic_forward(critic_obs, KP))

    # check against pure-JAX reference
    r_priv = ref_actor_forward(obs, P, False)
    r_hist = ref_actor_forward(obs, P, True)
    r_val = ref_critic_forward(critic_obs, P)

    assert mean_priv.shape == (B, NUM_ACTIONS)
    assert mean_hist.shape == (B, NUM_ACTIONS)
    assert value.shape == (B, 1)
    np.testing.assert_allclose(np.asarray(mean_priv), np.asarray(r_priv), rtol=2e-3, atol=2e-3)
    np.testing.assert_allclose(np.asarray(mean_hist), np.asarray(r_hist), rtol=2e-3, atol=2e-3)
    np.testing.assert_allclose(np.asarray(value), np.asarray(r_val), rtol=2e-3, atol=2e-3)

    print("KERNEL_OK")
</pallas_src>

<mosaic_0001>
module attributes {stable_mosaic.version = 11 : i64} {
  func.func @_actor_kernel(%arg0: i32, %arg1: memref<8x114xf32, #tpu.memory_space<vmem>>, %arg2: memref<328x32xf32, #tpu.memory_space<vmem>>, %arg3: memref<8x8xf32, #tpu.memory_space<vmem>>) attributes {dimension_semantics = [#tpu.dimension_semantics<parallel>], iteration_bounds = array<i64: 1>, scalar_prefetch = 0 : i64, scratch_operands = 0 : i64, tpu.core_type = #tpu.core_type<tc>, window_params = [{transform_indices = @transform_0, window_bounds = array<i64: 8, 114>}, {pipeline_mode = #tpu.pipeline_mode<synchronous>, transform_indices = @transform_1, window_bounds = array<i64: 328, 32>}, {transform_indices = @transform_2, window_bounds = array<i64: 8, 8>}]} {
    %c0 = arith.constant 0 : index
    %c0_0 = arith.constant 0 : index
    %0 = vector.load %arg1[%c0, %c0_0] : memref<8x114xf32, #tpu.memory_space<vmem>>, vector<8x114xf32>
    %1 = vector.extract_strided_slice %0 {offsets = [0, 0], sizes = [8, 8], strides = [1, 1]} : vector<8x114xf32> to vector<8x8xf32>
    %2 = vector.extract_strided_slice %0 {offsets = [0, 8], sizes = [8, 16], strides = [1, 1]} : vector<8x114xf32> to vector<8x16xf32>
    %3 = vector.extract_strided_slice %0 {offsets = [0, 24], sizes = [8, 4], strides = [1, 1]} : vector<8x114xf32> to vector<8x4xf32>
    %c0_1 = arith.constant 0 : index
    %c0_2 = arith.constant 0 : index
    %4 = vector.load %arg2[%c0_1, %c0_2] : memref<328x32xf32, #tpu.memory_space<vmem>>, vector<16x32xf32>
    %cst = arith.constant dense<0.000000e+00> : vector<8x32xf32>
    %5 = tpu.matmul %2, %4, %cst {dimension_numbers = #tpu.dot_dimension_numbers<[1], [0], [0], [1], [0, 0, 1, 1], [], []>} : vector<8x16xf32>, vector<16x32xf32>, vector<8x32xf32> -> vector<8x32xf32>
    %c16 = arith.constant 16 : index
    %c0_3 = arith.constant 0 : index
    %6 = vector.load %arg2[%c16, %c0_3] : memref<328x32xf32, #tpu.memory_space<vmem>>, vector<1x32xf32>
    %7 = vector.broadcast %6 : vector<1x32xf32> to vector<8x32xf32>
    %8 = arith.addf %5, %7 : vector<8x32xf32>
    %cst_4 = arith.constant 0.000000e+00 : f32
    %9 = vector.broadcast %cst_4 : f32 to vector<8x32xf32>
    %10 = arith.maximumf %8, %9 : vector<8x32xf32>
    %cst_5 = arith.constant 0.000000e+00 : f32
    %11 = vector.broadcast %cst_5 : f32 to vector<8x32xf32>
    %12 = arith.minimumf %8, %11 : vector<8x32xf32>
    %13 = math.exp %12 : vector<8x32xf32>
    %14 = arith.addf %10, %13 : vector<8x32xf32>
    %cst_6 = arith.constant 1.000000e+00 : f32
    %15 = vector.broadcast %cst_6 : f32 to vector<8x32xf32>
    %16 = arith.subf %14, %15 : vector<8x32xf32>
    %c24 = arith.constant 24 : index
    %c0_7 = arith.constant 0 : index
    %17 = vector.load %arg2[%c24, %c0_7] : memref<328x32xf32, #tpu.memory_space<vmem>>, vector<32x32xf32>
    %cst_8 = arith.constant dense<0.000000e+00> : vector<8x32xf32>
    %18 = tpu.matmul %16, %17, %cst_8 {dimension_numbers = #tpu.dot_dimension_numbers<[1], [0], [0], [1], [0, 0, 1, 1], [], []>} : vector<8x32xf32>, vector<32x32xf32>, vector<8x32xf32> -> vector<8x32xf32>
    %c56 = arith.constant 56 : index
    %c0_9 = arith.constant 0 : index
    %19 = vector.load %arg2[%c56, %c0_9] : memref<328x32xf32, #tpu.memory_space<vmem>>, vector<1x32xf32>
    %20 = vector.broadcast %19 : vector<1x32xf32> to vector<8x32xf32>
    %21 = arith.addf %18, %20 : vector<8x32xf32>
    %cst_10 = arith.constant 0.000000e+00 : f32
    %22 = vector.broadcast %cst_10 : f32 to vector<8x32xf32>
    %23 = arith.maximumf %21, %22 : vector<8x32xf32>
    %cst_11 = arith.constant 0.000000e+00 : f32
    %24 = vector.broadcast %cst_11 : f32 to vector<8x32xf32>
    %25 = arith.minimumf %21, %24 : vector<8x32xf32>
    %26 = math.exp %25 : vector<8x32xf32>
    %27 = arith.addf %23, %26 : vector<8x32xf32>
    %cst_12 = arith.constant 1.000000e+00 : f32
    %28 = vector.broadcast %cst_12 : f32 to vector<8x32xf32>
    %29 = arith.subf %27, %28 : vector<8x32xf32>
    %c64 = arith.constant 64 : index
    %c0_13 = arith.constant 0 : index
    %30 = vector.load %arg2[%c64, %c0_13] : memref<328x32xf32, #tpu.memory_space<vmem>>, vector<32x32xf32>
    %cst_14 = arith.constant dense<0.000000e+00> : vector<8x32xf32>
    %31 = tpu.matmul %29, %30, %cst_14 {dimension_numbers = #tpu.dot_dimension_numbers<[1], [0], [0], [1], [0, 0, 1, 1], [], []>} : vector<8x32xf32>, vector<32x32xf32>, vector<8x32xf32> -> vector<8x32xf32>
    %c96 = arith.constant 96 : index
    %c0_15 = arith.constant 0 : index
    %32 = vector.load %arg2[%c96, %c0_15] : memref<328x32xf32, #tpu.memory_space<vmem>>, vector<1x32xf32>
    %33 = vector.broadcast %32 : vector<1x32xf32> to vector<8x32xf32>
    %34 = arith.addf %31, %33 : vector<8x32xf32>
    %35 = math.tanh %34 : vector<8x32xf32>
    %36 = vector.extract_strided_slice %0 {offsets = [0, 28], sizes = [8, 6], strides = [1, 1]} : vector<8x114xf32> to vector<8x6xf32>
    %c104 = arith.constant 104 : index
    %c0_16 = arith.constant 0 : index
    %37 = vector.load %arg2[%c104, %c0_16] : memref<328x32xf32, #tpu.memory_space<vmem>>, vector<6x16xf32>
    %cst_17 = arith.constant dense<0.000000e+00> : vector<8x16xf32>
    %38 = tpu.matmul %36, %37, %cst_17 {dimension_numbers = #tpu.dot_dimension_numbers<[1], [0], [0], [1], [0, 0, 1, 1], [], []>} : vector<8x6xf32>, vector<6x16xf32>, vector<8x16xf32> -> vector<8x16xf32>
    %c112 = arith.constant 112 : index
    %c0_18 = arith.constant 0 : index
    %39 = vector.load %arg2[%c112, %c0_18] : memref<328x32xf32, #tpu.memory_space<vmem>>, vector<1x16xf32>
    %40 = vector.broadcast %39 : vector<1x16xf32> to vector<8x16xf32>
    %41 = arith.addf %38, %40 : vector<8x16xf32>
    %cst_19 = arith.constant 0.000000e+00 : f32
    %42 = vector.broadcast %cst_19 : f32 to vector<8x16xf32>
    %43 = arith.maximumf %41, %42 : vector<8x16xf32>
    %cst_20 = arith.constant 0.000000e+00 : f32
    %44 = vector.broadcast %cst_20 : f32 to vector<8x16xf32>
    %45 = arith.minimumf %41, %44 : vector<8x16xf32>
    %46 = math.exp %45 : vector<8x16xf32>
    %47 = arith.addf %43, %46 : vector<8x16xf32>
    %cst_21 = arith.constant 1.000000e+00 : f32
    %48 = vector.broadcast %cst_21 : f32 to vector<8x16xf32>
    %49 = arith.subf %47, %48 : vector<8x16xf32>
    %c120 = arith.constant 120 : index
    %c0_22 = arith.constant 0 : index
    %50 = vector.load %arg2[%c120, %c0_22] : memref<328x32xf32, #tpu.memory_space<vmem>>, vector<16x8xf32>
    %cst_23 = arith.constant dense<0.000000e+00> : vector<8x8xf32>
    %51 = tpu.matmul %49, %50, %cst_23 {dimension_numbers = #tpu.dot_dimension_numbers<[1], [0], [0], [1], [0, 0, 1, 1], [], []>} : vector<8x16xf32>, vector<16x8xf32>, vector<8x8xf32> -> vector<8x8xf32>
    %c136 = arith.constant 136 : index
    %c0_24 = arith.constant 0 : index
    %52 = vector.load %arg2[%c136, %c0_24] : memref<328x32xf32, #tpu.memory_space<vmem>>, vector<1x8xf32>
    %53 = vector.broadcast %52 : vector<1x8xf32> to vector<8x8xf32>
    %54 = arith.addf %51, %53 : vector<8x8xf32>
    %cst_25 = arith.constant 0.000000e+00 : f32
    %55 = vector.broadcast %cst_25 : f32 to vector<8x8xf32>
    %56 = arith.maximumf %54, %55 : vector<8x8xf32>
    %cst_26 = arith.constant 0.000000e+00 : f32
    %57 = vector.broadcast %cst_26 : f32 to vector<8x8xf32>
    %58 = arith.minimumf %54, %57 : vector<8x8xf32>
    %59 = math.exp %58 : vector<8x8xf32>
    %60 = arith.addf %56, %59 : vector<8x8xf32>
    %cst_27 = arith.constant 1.000000e+00 : f32
    %61 = vector.broadcast %cst_27 : f32 to vector<8x8xf32>
    %62 = arith.subf %60, %61 : vector<8x8xf32>
    %c144 = arith.constant 144 : index
    %c0_28 = arith.constant 0 : index
    %63 = vector.load %arg2[%c144, %c0_28] : memref<328x32xf32, #tpu.memory_space<vmem>>, vector<8x32xf32>
    %cst_29 = arith.constant dense<0.000000e+00> : vector<8x32xf32>
    %64 = tpu.matmul %1, %63, %cst_29 {dimension_numbers = #tpu.dot_dimension_numbers<[1], [0], [0], [1], [0, 0, 1, 1], [], []>} : vector<8x8xf32>, vector<8x32xf32>, vector<8x32xf32> -> vector<8x32xf32>
    %c152 = arith.constant 152 : index
    %c0_30 = arith.constant 0 : index
    %65 = vector.load %arg2[%c152, %c0_30] : memref<328x32xf32, #tpu.memory_space<vmem>>, vector<32x32xf32>
    %cst_31 = arith.constant dense<0.000000e+00> : vector<8x32xf32>
    %66 = tpu.matmul %35, %65, %cst_31 {dimension_numbers = #tpu.dot_dimension_numbers<[1], [0], [0], [1], [0, 0, 1, 1], [], []>} : vector<8x32xf32>, vector<32x32xf32>, vector<8x32xf32> -> vector<8x32xf32>
    %67 = arith.addf %64, %66 : vector<8x32xf32>
    %c184 = arith.constant 184 : index
    %c0_32 = arith.constant 0 : index
    %68 = vector.load %arg2[%c184, %c0_32] : memref<328x32xf32, #tpu.memory_space<vmem>>, vector<4x32xf32>
    %cst_33 = arith.constant dense<0.000000e+00> : vector<8x32xf32>
    %69 = tpu.matmul %3, %68, %cst_33 {dimension_numbers = #tpu.dot_dimension_numbers<[1], [0], [0], [1], [0, 0, 1, 1], [], []>} : vector<8x4xf32>, vector<4x32xf32>, vector<8x32xf32> -> vector<8x32xf32>
    %70 = arith.addf %67, %69 : vector<8x32xf32>
    %c192 = arith.constant 192 : index
    %c0_34 = arith.constant 0 : index
    %71 = vector.load %arg2[%c192, %c0_34] : memref<328x32xf32, #tpu.memory_space<vmem>>, vector<8x32xf32>
    %cst_35 = arith.constant dense<0.000000e+00> : vector<8x32xf32>
    %72 = tpu.matmul %62, %71, %cst_35 {dimension_numbers = #tpu.dot_dimension_numbers<[1], [0], [0], [1], [0, 0, 1, 1], [], []>} : vector<8x8xf32>, vector<8x32xf32>, vector<8x32xf32> -> vector<8x32xf32>
    %73 = arith.addf %70, %72 : vector<8x32xf32>
    %c200 = arith.constant 200 : index
    %c0_36 = arith.constant 0 : index
    %74 = vector.load %arg2[%c200, %c0_36] : memref<328x32xf32, #tpu.memory_space<vmem>>, vector<1x32xf32>
    %75 = vector.broadcast %74 : vector<1x32xf32> to vector<8x32xf32>
    %76 = arith.addf %73, %75 : vector<8x32xf32>
    %cst_37 = arith.constant 0.000000e+00 : f32
    %77 = vector.broadcast %cst_37 : f32 to vector<8x32xf32>
    %78 = arith.maximumf %76, %77 : vector<8x32xf32>
    %cst_38 = arith.constant 0.000000e+00 : f32
    %79 = vector.broadcast %cst_38 : f32 to vector<8x32xf32>
    %80 = arith.minimumf %76, %79 : vector<8x32xf32>
    %81 = math.exp %80 : vector<8x32xf32>
    %82 = arith.addf %78, %81 : vector<8x32xf32>
    %cst_39 = arith.constant 1.000000e+00 : f32
    %83 = vector.broadcast %cst_39 : f32 to vector<8x32xf32>
    %84 = arith.subf %82, %83 : vector<8x32xf32>
    %c208 = arith.constant 208 : index
    %c0_40 = arith.constant 0 : index
    %85 = vector.load %arg2[%c208, %c0_40] : memref<328x32xf32, #tpu.memory_space<vmem>>, vector<32x32xf32>
    %cst_41 = arith.constant dense<0.000000e+00> : vector<8x32xf32>
    %86 = tpu.matmul %84, %85, %cst_41 {dimension_numbers = #tpu.dot_dimension_numbers<[1], [0], [0], [1], [0, 0, 1, 1], [], []>} : vector<8x32xf32>, vector<32x32xf32>, vector<8x32xf32> -> vector<8x32xf32>
    %c240 = arith.constant 240 : index
    %c0_42 = arith.constant 0 : index
    %87 = vector.load %arg2[%c240, %c0_42] : memref<328x32xf32, #tpu.memory_space<vmem>>, vector<1x32xf32>
    %88 = vector.broadcast %87 : vector<1x32xf32> to vector<8x32xf32>
    %89 = arith.addf %86, %88 : vector<8x32xf32>
    %cst_43 = arith.constant 0.000000e+00 : f32
    %90 = vector.broadcast %cst_43 : f32 to vector<8x32xf32>
    %91 = arith.maximumf %89, %90 : vector<8x32xf32>
    %cst_44 = arith.constant 0.000000e+00 : f32
    %92 = vector.broadcast %cst_44 : f32 to vector<8x32xf32>
    %93 = arith.minimumf %89, %92 : vector<8x32xf32>
    %94 = math.exp %93 : vector<8x32xf32>
    %95 = arith.addf %91, %94 : vector<8x32xf32>
    %cst_45 = arith.constant 1.000000e+00 : f32
    %96 = vector.broadcast %cst_45 : f32 to vector<8x32xf32>
    %97 = arith.subf %95, %96 : vector<8x32xf32>
    %c248 = arith.constant 248 : index
    %c0_46 = arith.constant 0 : index
    %98 = vector.load %arg2[%c248, %c0_46] : memref<328x32xf32, #tpu.memory_space<vmem>>, vector<32x32xf32>
    %cst_47 = arith.constant dense<0.000000e+00> : vector<8x32xf32>
    %99 = tpu.matmul %97, %98, %cst_47 {dimension_numbers = #tpu.dot_dimension_numbers<[1], [0], [0], [1], [0, 0, 1, 1], [], []>} : vector<8x32xf32>, vector<32x32xf32>, vector<8x32xf32> -> vector<8x32xf32>
    %c280 = arith.constant 280 : index
    %c0_48 = arith.constant 0 : index
    %100 = vector.load %arg2[%c280, %c0_48] : memref<328x32xf32, #tpu.memory_space<vmem>>, vector<1x32xf32>
    %101 = vector.broadcast %100 : vector<1x32xf32> to vector<8x32xf32>
    %102 = arith.addf %99, %101 : vector<8x32xf32>
    %cst_49 = arith.constant 0.000000e+00 : f32
    %103 = vector.broadcast %cst_49 : f32 to vector<8x32xf32>
    %104 = arith.maximumf %102, %103 : vector<8x32xf32>
    %cst_50 = arith.constant 0.000000e+00 : f32
    %105 = vector.broadcast %cst_50 : f32 to vector<8x32xf32>
    %106 = arith.minimumf %102, %105 : vector<8x32xf32>
    %107 = math.exp %106 : vector<8x32xf32>
    %108 = arith.addf %104, %107 : vector<8x32xf32>
    %cst_51 = arith.constant 1.000000e+00 : f32
    %109 = vector.broadcast %cst_51 : f32 to vector<8x32xf32>
    %110 = arith.subf %108, %109 : vector<8x32xf32>
    %c288 = arith.constant 288 : index
    %c0_52 = arith.constant 0 : index
    %111 = vector.load %arg2[%c288, %c0_52] : memref<328x32xf32, #tpu.memory_space<vmem>>, vector<32x8xf32>
    %cst_53 = arith.constant dense<0.000000e+00> : vector<8x8xf32>
    %112 = tpu.matmul %110, %111, %cst_53 {dimension_numbers = #tpu.dot_dimension_numbers<[1], [0], [0], [1], [0, 0, 1, 1], [], []>} : vector<8x32xf32>, vector<32x8xf32>, vector<8x8xf32> -> vector<8x8xf32>
    %c320 = arith.constant 320 : index
    %c0_54 = arith.constant 0 : index
    %113 = vector.load %arg2[%c320, %c0_54] : memref<328x32xf32, #tpu.memory_space<vmem>>, vector<1x8xf32>
    %114 = vector.broadcast %113 : vector<1x8xf32> to vector<8x8xf32>
    %115 = arith.addf %112, %114 : vector<8x8xf32>
    %c0_55 = arith.constant 0 : index
    %c0_56 = arith.constant 0 : index
    %116 = vector.load %arg3[%c0_55, %c0_56] : memref<8x8xf32, #tpu.memory_space<vmem>>, vector<8x8xf32>
    tpu.vector_store %arg3[%c0_55, %c0_56], %115 {strides = array<i32>} : memref<8x8xf32, #tpu.memory_space<vmem>>, vector<8x8xf32>,
    return
  }
  func.func @transform_0(%arg0: i32) -> (i32, i32) {
    %c0_i32 = arith.constant 0 : i32
    %c0_i32_0 = arith.constant 0 : i32
    return %arg0, %c0_i32 : i32, i32
  }
  func.func @transform_1(%arg0: i32) -> (i32, i32) {
    %c0_i32 = arith.constant 0 : i32
    %c0_i32_0 = arith.constant 0 : i32
    %c0_i32_1 = arith.constant 0 : i32
    return %c0_i32, %c0_i32_0 : i32, i32
  }
  func.func @transform_2(%arg0: i32) -> (i32, i32) {
    %c0_i32 = arith.constant 0 : i32
    %c0_i32_0 = arith.constant 0 : i32
    return %arg0, %c0_i32 : i32, i32
  }
}

</mosaic_0001>

<llo_original>
// kernel: actor_forward.1
$region0: #{actor_forward.1}
  #allocation0 [shape = 'u32[]', space=smem, size = 0x4, offset = 0x4, fixed_abs, tag = 'smem constant byte address 0x4 - core index']
  #allocation1 [shape = 'u32[144,128]{1,0:T(1,128)}', space=vmem, size = 0x12000, scoped, tag = 'internal scratch']
  %s0 = inlined_call_operand.vmem [shape: f32[2,114], index: 0, kind: input, shape index: {}]
  %s1 = inlined_call_operand.vmem [shape: f32[328,32], index: 1, kind: input, shape index: {}]
  %s2 = inlined_call_operand.hbm [shape: f32[2,8], index: 2, kind: output, shape index: {}]
  %s3 = sld [smem:[#allocation0]]
  $region18: #{actor_forward.1} parent=0
    _
  %s5 = ssub.s32 1, %s3
  %s6 = scalar_select 0, %s5, %s3
  $region1: #{actor_forward.1} parent=0
    #allocation2 [shape = 'u8[4096]{0}', space=vmem, size = 0x1000, scoped, tag = 'output window, operand 0, single buffered']
    #allocation3 [shape = 's32[1]{0}', space=sflag, size = 0x4, scoped, tag = 'scoped memory for actor_forward.1']
    %7 = vsyncpa [#allocation3], 0
    // Predicated region
    $region2: #{actor_forward.1} parent=1 // pred_check
      _
    $region3: #{actor_forward.1} parent=1 // pred_check_branch
      %9 = sbr.rel (0) target = $region5
    $region4: #{actor_forward.1} parent=1 // pred_region
      _
    $region5: #{actor_forward.1} parent=1 // pred_fallthru
      _
    // Predicated region
    $region6: #{actor_forward.1} parent=1 // pred_check
      _
    $region7: #{actor_forward.1} parent=1 // pred_check_branch
      %11 = sbr.rel (0) target = $region9
    $region8: #{actor_forward.1} parent=1 // pred_region
      _
    $region9: #{actor_forward.1} parent=1 // pred_fallthru
      _
    %v12 = vld [vmem:[%s0] sm:$0xff]
    %v13 = vld [vmem:[%s1] sm:$0xff]
    %v14 = vld [vmem:[%s1 + $0x8] sm:$0xff]
    %v15 = vld [vmem:[%s1 + $0x10] sm:$0x1]
    %v16 = vlaneseq
    %v17 = vshrl.u32 %v16, 7
    %v18 = vsub.s32 0, %v17
    %v19 = vrot.slane %v15, %v18
    %21 = vrot.lane.b32.xlu0 %v12, 120
    %v22 = vpop.permute.xlu0 %21
    %vm23 = vcmask 130048
    %v24 = vsel %vm23, %v22, 0
    %26 = vmatprep.subr.mxu0 0.0
    %27 = vmatpush1.msra.mxu0 %v13
    %28 = vmatprep.subr.mxu0 0.0
    %29 = vmatpush1.msra.mxu0 %v14
    %30 = vmatprep.subr.mxu0 0.0
    %31 = vmatpush1.msra.mxu0 0.0
    %32 = vmatprep.subr.mxu0 0.0
    %33 = vmatpush1.msra.mxu0 0.0
    %34 = vmatprep.subr.mxu0 0.0
    %35 = vmatpush1.msra.mxu0 0.0
    %36 = vmatprep.subr.mxu0 0.0
    %37 = vmatpush1.msra.mxu0 0.0
    %38 = vmatprep.subr.mxu0 0.0
    %39 = vmatpush1.msra.mxu0 0.0
    %40 = vmatprep.subr.mxu0 0.0
    %41 = vmatpush1.msra.mxu0 0.0
    %42 = vmatprep.subr.mxu0 0.0
    %43 = vmatpush1.msra.mxu0 0.0
    %44 = vmatprep.subr.mxu0 0.0
    %45 = vmatpush1.msra.mxu0 0.0
    %46 = vmatprep.subr.mxu0 0.0
    %47 = vmatpush1.msra.mxu0 0.0
    %48 = vmatprep.subr.mxu0 0.0
    %49 = vmatpush1.msra.mxu0 0.0
    %50 = vmatprep.subr.mxu0 0.0
    %51 = vmatpush1.msra.mxu0 0.0
    %52 = vmatprep.subr.mxu0 0.0
    %53 = vmatpush1.msra.mxu0 0.0
    %54 = vmatprep.subr.mxu0 0.0
    %55 = vmatpush1.msra.mxu0 0.0
    %56 = vmatprep.subr.mxu0 0.0
    %57 = vmatpush1.msra.mxu0 0.0
    %58 = vmatprep.subr.mxu0 0.0
    %59 = vmatpush1.msra.mxu0 0.0
    %60 = vmatprep.subr.mxu0 0.0
    %61 = vmatpush1.msra.mxu0 0.0
    %62 = vmatprep.subr.mxu0 0.0
    %63 = vmatpush1.msra.mxu0 0.0
    %64 = vmatprep.subr.mxu0 0.0
    %65 = vmatpush1.msra.mxu0 0.0
    %66 = vmatprep.subr.mxu0 0.0
    %67 = vmatpush1.msra.mxu0 0.0
    %68 = vmatprep.subr.mxu0 0.0
    %69 = vmatpush1.msra.mxu0 0.0
    %70 = vmatprep.subr.mxu0 0.0
    %71 = vmatpush1.msra.mxu0 0.0
    %72 = vmatprep.subr.mxu0 0.0
    %73 = vmatpush1.msra.mxu0 0.0
    %74 = vmatprep.subr.mxu0 0.0
    %75 = vmatpush1.msra.mxu0 0.0
    %76 = vmatprep.subr.mxu0 0.0
    %77 = vmatpush1.msra.mxu0 0.0
    %78 = vmatprep.subr.mxu0 0.0
    %79 = vmatpush1.msra.mxu0 0.0
    %80 = vmatprep.subr.mxu0 0.0
    %81 = vmatpush1.msra.mxu0 0.0
    %82 = vmatprep.subr.mxu0 0.0
    %83 = vmatpush1.msra.mxu0 0.0
    %84 = vmatprep.subr.mxu0 0.0
    %85 = vmatpush1.msra.mxu0 0.0
    %86 = vmatprep.subr.mxu0 0.0
    %87 = vmatpush1.msra.mxu0 0.0
    %88 = vmatprep.subr.mxu0 0.0
    %89 = vmatpush1.msra.mxu0 0.0
    %90 = vmatprep.mubr.f32.mxu0 0.0
    %91 = vmatmul.mubr.f32.gmra.mrb[0].mxu0 %v24
    %v92 = vpop.f32.mrb[0].mxu0
    %v93 = vadd.f32 %v19, %v92
    %v94 = vpop.f32.mrb[0].mxu0
    %95 = vdwg.mxu0
    %v96 = vmax.f32 %v93, 0.0
    %v97 = vmin.f32 %v93, 0.0
    %v98 = vmul.f32 %v97, 1.442695
    %v99 = vpow.pop %v98
    %v100 = vadd.f32 %v96, %v99
    %v101 = vsub.f32 %v100, 1.0
    %v102 = vld [vmem:[%s1 + $0x18] sm:$0xff]
    %v103 = vld [vmem:[%s1 + $0x20] sm:$0xff]
    %v104 = vld [vmem:[%s1 + $0x28] sm:$0xff]
    %v105 = vld [vmem:[%s1 + $0x30] sm:$0xff]
    %v106 = vld [vmem:[%s1 + $0x38] sm:$0x1]
    %v107 = vlaneseq
    %v108 = vshrl.u32 %v107, 7
    %v109 = vsub.s32 0, %v108
    %v110 = vrot.slane %v106, %v109
    %vm111 = vcmask 261120
    %v113 = vsel %vm111, %v101, 0
    %115 = vmatprep.subr.mxu0 0.0
    %116 = vmatpush1.msra.mxu0 %v102
    %117 = vmatprep.subr.mxu0 0.0
    %118 = vmatpush1.msra.mxu0 %v103
    %119 = vmatprep.subr.mxu0 0.0
    %120 = vmatpush1.msra.mxu0 %v104
    %121 = vmatprep.subr.mxu0 0.0
    %122 = vmatpush1.msra.mxu0 %v105
    %123 = vmatprep.subr.mxu0 0.0
    %124 = vmatpush1.msra.mxu0 0.0
    %125 = vmatprep.subr.mxu0 0.0
    %126 = vmatpush1.msra.mxu0 0.0
    %127 = vmatprep.subr.mxu0 0.0
    %128 = vmatpush1.msra.mxu0 0.0
    %129 = vmatprep.subr.mxu0 0.0
    %130 = vmatpush1.msra.mxu0 0.0
    %131 = vmatprep.subr.mxu0 0.0
    %132 = vmatpush1.msra.mxu0 0.0
    %133 = vmatprep.subr.mxu0 0.0
    %134 = vmatpush1.msra.mxu0 0.0
    %135 = vmatprep.subr.mxu0 0.0
    %136 = vmatpush1.msra.mxu0 0.0
    %137 = vmatprep.subr.mxu0 0.0
    %138 = vmatpush1.msra.mxu0 0.0
    %139 = vmatprep.subr.mxu0 0.0
    %140 = vmatpush1.msra.mxu0 0.0
    %141 = vmatprep.subr.mxu0 0.0
    %142 = vmatpush1.msra.mxu0 0.0
    %143 = vmatprep.subr.mxu0 0.0
    %144 = vmatpush1.msra.mxu0 0.0
    %145 = vmatprep.subr.mxu0 0.0
    %146 = vmatpush1.msra.mxu0 0.0
    %147 = vmatprep.subr.mxu0 0.0
    %148 = vmatpush1.msra.mxu0 0.0
    %149 = vmatprep.subr.mxu0 0.0
    %150 = vmatpush1.msra.mxu0 0.0
    %151 = vmatprep.subr.mxu0 0.0
    %152 = vmatpush1.msra.mxu0 0.0
    %153 = vmatprep.subr.mxu0 0.0
    %154 = vmatpush1.msra.mxu0 0.0
    %155 = vmatprep.subr.mxu0 0.0
    %156 = vmatpush1.msra.mxu0 0.0
    %157 = vmatprep.subr.mxu0 0.0
    %158 = vmatpush1.msra.mxu0 0.0
    %159 = vmatprep.subr.mxu0 0.0
    %160 = vmatpush1.msra.mxu0 0.0
    %161 = vmatprep.subr.mxu0 0.0
    %162 = vmatpush1.msra.mxu0 0.0
    %163 = vmatprep.subr.mxu0 0.0
    %164 = vmatpush1.msra.mxu0 0.0
    %165 = vmatprep.subr.mxu0 0.0
    %166 = vmatpush1.msra.mxu0 0.0
    %167 = vmatprep.subr.mxu0 0.0
    %168 = vmatpush1.msra.mxu0 0.0
    %169 = vmatprep.subr.mxu0 0.0
    %170 = vmatpush1.msra.mxu0 0.0
    %171 = vmatprep.subr.mxu0 0.0
    %172 = vmatpush1.msra.mxu0 0.0
    %173 = vmatprep.subr.mxu0 0.0
    %174 = vmatpush1.msra.mxu0 0.0
    %175 = vmatprep.subr.mxu0 0.0
    %176 = vmatpush1.msra.mxu0 0.0
    %177 = vmatprep.subr.mxu0 0.0
    %178 = vmatpush1.msra.mxu0 0.0
    %179 = vmatprep.mubr.f32.mxu0 0.0
    %180 = vmatmul.mubr.f32.gmra.mrb[0].mxu0 %v113
    %v181 = vpop.f32.mrb[0].mxu0
    %v182 = vadd.f32 %v110, %v181
    %v183 = vpop.f32.mrb[0].mxu0
    %184 = vdwg.mxu0
    %v185 = vmax.f32 %v182, 0.0
    %v186 = vmin.f32 %v182, 0.0
    %v187 = vmul.f32 %v186, 1.442695
    %v188 = vpow.pop %v187
    %v189 = vadd.f32 %v185, %v188
    %v190 = vsub.f32 %v189, 1.0
    %v191 = vld [vmem:[%s1 + $0x40] sm:$0xff]
    %v192 = vld [vmem:[%s1 + $0x48] sm:$0xff]
    %v193 = vld [vmem:[%s1 + $0x50] sm:$0xff]
    %v194 = vld [vmem:[%s1 + $0x58] sm:$0xff]
    %v195 = vld [vmem:[%s1 + $0x60] sm:$0x1]
    %v196 = vlaneseq
    %v197 = vshrl.u32 %v196, 7
    %v198 = vsub.s32 0, %v197
    %v199 = vrot.slane %v195, %v198
    %v201 = vsel %vm111, %v190, 0
    %203 = vmatprep.subr.mxu0 0.0
    %204 = vmatpush1.msra.mxu0 %v191
    %205 = vmatprep.subr.mxu0 0.0
    %206 = vmatpush1.msra.mxu0 %v192
    %207 = vmatprep.subr.mxu0 0.0
    %208 = vmatpush1.msra.mxu0 %v193
    %209 = vmatprep.subr.mxu0 0.0
    %210 = vmatpush1.msra.mxu0 %v194
    %211 = vmatprep.subr.mxu0 0.0
    %212 = vmatpush1.msra.mxu0 0.0
    %213 = vmatprep.subr.mxu0 0.0
    %214 = vmatpush1.msra.mxu0 0.0
    %215 = vmatprep.subr.mxu0 0.0
    %216 = vmatpush1.msra.mxu0 0.0
    %217 = vmatprep.subr.mxu0 0.0
    %218 = vmatpush1.msra.mxu0 0.0
    %219 = vmatprep.subr.mxu0 0.0
    %220 = vmatpush1.msra.mxu0 0.0
    %221 = vmatprep.subr.mxu0 0.0
    %222 = vmatpush1.msra.mxu0 0.0
    %223 = vmatprep.subr.mxu0 0.0
    %224 = vmatpush1.msra.mxu0 0.0
    %225 = vmatprep.subr.mxu0 0.0
    %226 = vmatpush1.msra.mxu0 0.0
    %227 = vmatprep.subr.mxu0 0.0
    %228 = vmatpush1.msra.mxu0 0.0
    %229 = vmatprep.subr.mxu0 0.0
    %230 = vmatpush1.msra.mxu0 0.0
    %231 = vmatprep.subr.mxu0 0.0
    %232 = vmatpush1.msra.mxu0 0.0
    %233 = vmatprep.subr.mxu0 0.0
    %234 = vmatpush1.msra.mxu0 0.0
    %235 = vmatprep.subr.mxu0 0.0
    %236 = vmatpush1.msra.mxu0 0.0
    %237 = vmatprep.subr.mxu0 0.0
    %238 = vmatpush1.msra.mxu0 0.0
    %239 = vmatprep.subr.mxu0 0.0
    %240 = vmatpush1.msra.mxu0 0.0
    %241 = vmatprep.subr.mxu0 0.0
    %242 = vmatpush1.msra.mxu0 0.0
    %243 = vmatprep.subr.mxu0 0.0
    %244 = vmatpush1.msra.mxu0 0.0
    %245 = vmatprep.subr.mxu0 0.0
    %246 = vmatpush1.msra.mxu0 0.0
    %247 = vmatprep.subr.mxu0 0.0
    %248 = vmatpush1.msra.mxu0 0.0
    %249 = vmatprep.subr.mxu0 0.0
    %250 = vmatpush1.msra.mxu0 0.0
    %251 = vmatprep.subr.mxu0 0.0
    %252 = vmatpush1.msra.mxu0 0.0
    %253 = vmatprep.subr.mxu0 0.0
    %254 = vmatpush1.msra.mxu0 0.0
    %255 = vmatprep.subr.mxu0 0.0
    %256 = vmatpush1.msra.mxu0 0.0
    %257 = vmatprep.subr.mxu0 0.0
    %258 = vmatpush1.msra.mxu0 0.0
    %259 = vmatprep.subr.mxu0 0.0
    %260 = vmatpush1.msra.mxu0 0.0
    %261 = vmatprep.subr.mxu0 0.0
    %262 = vmatpush1.msra.mxu0 0.0
    %263 = vmatprep.subr.mxu0 0.0
    %264 = vmatpush1.msra.mxu0 0.0
    %265 = vmatprep.subr.mxu0 0.0
    %266 = vmatpush1.msra.mxu0 0.0
    %267 = vmatprep.mubr.f32.mxu0 0.0
    %268 = vmatmul.mubr.f32.gmra.mrb[0].mxu0 %v201
    %v269 = vpop.f32.mrb[0].mxu0
    %v270 = vadd.f32 %v199, %v269
    %v271 = vpop.f32.mrb[0].mxu0
    %272 = vdwg.mxu0
    %v273 = vtanh.pop %v270
    %v274 = vld [vmem:[%s1 + $0x68] sm:$0x3f]
    %v275 = vld [vmem:[%s1 + $0x70] sm:$0x1]
    %v276 = vlaneseq
    %v277 = vshrl.u32 %v276, 7
    %v278 = vsub.s32 0, %v277
    %v279 = vrot.slane %v275, %v278
    %280 = vrot.lane.b32.xlu0 %v12, 100
    %v281 = vpop.permute.xlu0 %280
    %vm282 = vcmask 48128
    %v283 = vsel %vm282, %v281, 0
    %vm285 = vcmask 1045504
    %v287 = vsel %vm285, %v274, 0
    %289 = vmatprep.subr.mxu0 0.0
    %290 = vmatpush1.msra.mxu0 %v287
    %291 = vmatprep.subr.mxu0 0.0
    %292 = vmatpush1.msra.mxu0 0.0
    %293 = vmatprep.subr.mxu0 0.0
    %294 = vmatpush1.msra.mxu0 0.0
    %295 = vmatprep.subr.mxu0 0.0
    %296 = vmatpush1.msra.mxu0 0.0
    %297 = vmatprep.subr.mxu0 0.0
    %298 = vmatpush1.msra.mxu0 0.0
    %299 = vmatprep.subr.mxu0 0.0
    %300 = vmatpush1.msra.mxu0 0.0
    %301 = vmatprep.subr.mxu0 0.0
    %302 = vmatpush1.msra.mxu0 0.0
    %303 = vmatprep.subr.mxu0 0.0
    %304 = vmatpush1.msra.mxu0 0.0
    %305 = vmatprep.subr.mxu0 0.0
    %306 = vmatpush1.msra.mxu0 0.0
    %307 = vmatprep.subr.mxu0 0.0
    %308 = vmatpush1.msra.mxu0 0.0
    %309 = vmatprep.subr.mxu0 0.0
    %310 = vmatpush1.msra.mxu0 0.0
    %311 = vmatprep.subr.mxu0 0.0
    %312 = vmatpush1.msra.mxu0 0.0
    %313 = vmatprep.subr.mxu0 0.0
    %314 = vmatpush1.msra.mxu0 0.0
    %315 = vmatprep.subr.mxu0 0.0
    %316 = vmatpush1.msra.mxu0 0.0
    %317 = vmatprep.subr.mxu0 0.0
    %318 = vmatpush1.msra.mxu0 0.0
    %319 = vmatprep.subr.mxu0 0.0
    %320 = vmatpush1.msra.mxu0 0.0
    %321 = vmatprep.subr.mxu0 0.0
    %322 = vmatpush1.msra.mxu0 0.0
    %323 = vmatprep.subr.mxu0 0.0
    %324 = vmatpush1.msra.mxu0 0.0
    %325 = vmatprep.subr.mxu0 0.0
    %326 = vmatpush1.msra.mxu0 0.0
    %327 = vmatprep.subr.mxu0 0.0
    %328 = vmatpush1.msra.mxu0 0.0
    %329 = vmatprep.subr.mxu0 0.0
    %330 = vmatpush1.msra.mxu0 0.0
    %331 = vmatprep.subr.mxu0 0.0
    %332 = vmatpush1.msra.mxu0 0.0
    %333 = vmatprep.subr.mxu0 0.0
    %334 = vmatpush1.msra.mxu0 0.0
    %335 = vmatprep.subr.mxu0 0.0
    %336 = vmatpush1.msra.mxu0 0.0
    %337 = vmatprep.subr.mxu0 0.0
    %338 = vmatpush1.msra.mxu0 0.0
    %339 = vmatprep.subr.mxu0 0.0
    %340 = vmatpush1.msra.mxu0 0.0
    %341 = vmatprep.subr.mxu0 0.0
    %342 = vmatpush1.msra.mxu0 0.0
    %343 = vmatprep.subr.mxu0 0.0
    %344 = vmatpush1.msra.mxu0 0.0
    %345 = vmatprep.subr.mxu0 0.0
    %346 = vmatpush1.msra.mxu0 0.0
    %347 = vmatprep.subr.mxu0 0.0
    %348 = vmatpush1.msra.mxu0 0.0
    %349 = vmatprep.subr.mxu0 0.0
    %350 = vmatpush1.msra.mxu0 0.0
    %351 = vmatprep.subr.mxu0 0.0
    %352 = vmatpush1.msra.mxu0 0.0
    %353 = vmatprep.mubr.f32.mxu0 0.0
    %354 = vmatmul.mubr.f32.gmra.mrb[0].mxu0 %v283
    %v355 = vpop.f32.mrb[0].mxu0
    %v356 = vadd.f32 %v279, %v355
    %v357 = vpop.f32.mrb[0].mxu0
    %358 = vdwg.mxu0
    %v359 = vmax.f32 %v356, 0.0
    %v360 = vmin.f32 %v356, 0.0
    %v361 = vmul.f32 %v360, 1.442695
    %v362 = vpow.pop %v361
    %v363 = vadd.f32 %v359, %v362
    %v364 = vsub.f32 %v363, 1.0
    %v365 = vld [vmem:[%s1 + $0x78] sm:$0xff]
    %v366 = vld [vmem:[%s1 + $0x80] sm:$0xff]
    %v367 = vld [vmem:[%s1 + $0x88] sm:$0x1]
    %v368 = vlaneseq
    %v369 = vshrl.u32 %v368, 7
    %v370 = vsub.s32 0, %v369
    %v371 = vrot.slane %v367, %v370
    %v373 = vsel %vm23, %v364, 0
    %375 = vmatprep.subr.mxu0 0.0
    %376 = vmatpush1.msra.mxu0 %v365
    %377 = vmatprep.subr.mxu0 0.0
    %378 = vmatpush1.msra.mxu0 %v366
    %379 = vmatprep.subr.mxu0 0.0
    %380 = vmatpush1.msra.mxu0 0.0
    %381 = vmatprep.subr.mxu0 0.0
    %382 = vmatpush1.msra.mxu0 0.0
    %383 = vmatprep.subr.mxu0 0.0
    %384 = vmatpush1.msra.mxu0 0.0
    %385 = vmatprep.subr.mxu0 0.0
    %386 = vmatpush1.msra.mxu0 0.0
    %387 = vmatprep.subr.mxu0 0.0
    %388 = vmatpush1.msra.mxu0 0.0
    %389 = vmatprep.subr.mxu0 0.0
    %390 = vmatpush1.msra.mxu0 0.0
    %391 = vmatprep.subr.mxu0 0.0
    %392 = vmatpush1.msra.mxu0 0.0
    %393 = vmatprep.subr.mxu0 0.0
    %394 = vmatpush1.msra.mxu0 0.0
    %395 = vmatprep.subr.mxu0 0.0
    %396 = vmatpush1.msra.mxu0 0.0
    %397 = vmatprep.subr.mxu0 0.0
    %398 = vmatpush1.msra.mxu0 0.0
    %399 = vmatprep.subr.mxu0 0.0
    %400 = vmatpush1.msra.mxu0 0.0
    %401 = vmatprep.subr.mxu0 0.0
    %402 = vmatpush1.msra.mxu0 0.0
    %403 = vmatprep.subr.mxu0 0.0
    %404 = vmatpush1.msra.mxu0 0.0
    %405 = vmatprep.subr.mxu0 0.0
    %406 = vmatpush1.msra.mxu0 0.0
    %407 = vmatprep.subr.mxu0 0.0
    %408 = vmatpush1.msra.mxu0 0.0
    %409 = vmatprep.subr.mxu0 0.0
    %410 = vmatpush1.msra.mxu0 0.0
    %411 = vmatprep.subr.mxu0 0.0
    %412 = vmatpush1.msra.mxu0 0.0
    %413 = vmatprep.subr.mxu0 0.0
    %414 = vmatpush1.msra.mxu0 0.0
    %415 = vmatprep.subr.mxu0 0.0
    %416 = vmatpush1.msra.mxu0 0.0
    %417 = vmatprep.subr.mxu0 0.0
    %418 = vmatpush1.msra.mxu0 0.0
    %419 = vmatprep.subr.mxu0 0.0
    %420 = vmatpush1.msra.mxu0 0.0
    %421 = vmatprep.subr.mxu0 0.0
    %422 = vmatpush1.msra.mxu0 0.0
    %423 = vmatprep.subr.mxu0 0.0
    %424 = vmatpush1.msra.mxu0 0.0
    %425 = vmatprep.subr.mxu0 0.0
    %426 = vmatpush1.msra.mxu0 0.0
    %427 = vmatprep.subr.mxu0 0.0
    %428 = vmatpush1.msra.mxu0 0.0
    %429 = vmatprep.subr.mxu0 0.0
    %430 = vmatpush1.msra.mxu0 0.0
    %431 = vmatprep.subr.mxu0 0.0
    %432 = vmatpush1.msra.mxu0 0.0
    %433 = vmatprep.subr.mxu0 0.0
    %434 = vmatpush1.msra.mxu0 0.0
    %435 = vmatprep.subr.mxu0 0.0
    %436 = vmatpush1.msra.mxu0 0.0
    %437 = vmatprep.subr.mxu0 0.0
    %438 = vmatpush1.msra.mxu0 0.0
    %439 = vmatprep.mubr.f32.mxu0 0.0
    %440 = vmatmul.mubr.f32.gmra.mrb[0].mxu0 %v373
    %v441 = vpop.f32.mrb[0].mxu0
    %v442 = vadd.f32 %v371, %v441
    %v443 = vpop.f32.mrb[0].mxu0
    %444 = vdwg.mxu0
    %v445 = vmax.f32 %v442, 0.0
    %v446 = vmin.f32 %v442, 0.0
    %v447 = vmul.f32 %v446, 1.442695
    %v448 = vpow.pop %v447
    %v449 = vadd.f32 %v445, %v448
    %v450 = vsub.f32 %v449, 1.0
    %v451 = vld [vmem:[%s1 + $0x90] sm:$0xff]
    %v452 = vld [vmem:[%s1 + $0x98] sm:$0xff]
    %v453 = vld [vmem:[%s1 + $0xa0] sm:$0xff]
    %v454 = vld [vmem:[%s1 + $0xa8] sm:$0xff]
    %v455 = vld [vmem:[%s1 + $0xb0] sm:$0xff]
    %v457 = vsel %vm111, %v273, 0
    %459 = vmatprep.subr.mxu0 0.0
    %460 = vmatpush1.msra.mxu0 %v452
    %461 = vmatprep.subr.mxu0 0.0
    %462 = vmatpush1.msra.mxu0 %v453
    %463 = vmatprep.subr.mxu0 0.0
    %464 = vmatpush1.msra.mxu0 %v454
    %465 = vmatprep.subr.mxu0 0.0
    %466 = vmatpush1.msra.mxu0 %v455
    %467 = vmatprep.subr.mxu0 0.0
    %468 = vmatpush1.msra.mxu0 0.0
    %469 = vmatprep.subr.mxu0 0.0
    %470 = vmatpush1.msra.mxu0 0.0
    %471 = vmatprep.subr.mxu0 0.0
    %472 = vmatpush1.msra.mxu0 0.0
    %473 = vmatprep.subr.mxu0 0.0
    %474 = vmatpush1.msra.mxu0 0.0
    %475 = vmatprep.subr.mxu0 0.0
    %476 = vmatpush1.msra.mxu0 0.0
    %477 = vmatprep.subr.mxu0 0.0
    %478 = vmatpush1.msra.mxu0 0.0
    %479 = vmatprep.subr.mxu0 0.0
    %480 = vmatpush1.msra.mxu0 0.0
    %481 = vmatprep.subr.mxu0 0.0
    %482 = vmatpush1.msra.mxu0 0.0
    %483 = vmatprep.subr.mxu0 0.0
    %484 = vmatpush1.msra.mxu0 0.0
    %485 = vmatprep.subr.mxu0 0.0
    %486 = vmatpush1.msra.mxu0 0.0
    %487 = vmatprep.subr.mxu0 0.0
    %488 = vmatpush1.msra.mxu0 0.0
    %489 = vmatprep.subr.mxu0 0.0
    %490 = vmatpush1.msra.mxu0 0.0
    %491 = vmatprep.subr.mxu0 0.0
    %492 = vmatpush1.msra.mxu0 0.0
    %493 = vmatprep.subr.mxu0 0.0
    %494 = vmatpush1.msra.mxu0 0.0
    %495 = vmatprep.subr.mxu0 0.0
    %496 = vmatpush1.msra.mxu0 0.0
    %497 = vmatprep.subr.mxu0 0.0
    %498 = vmatpush1.msra.mxu0 0.0
    %499 = vmatprep.subr.mxu0 0.0
    %500 = vmatpush1.msra.mxu0 0.0
    %501 = vmatprep.subr.mxu0 0.0
    %502 = vmatpush1.msra.mxu0 0.0
    %503 = vmatprep.subr.mxu0 0.0
    %504 = vmatpush1.msra.mxu0 0.0
    %505 = vmatprep.subr.mxu0 0.0
    %506 = vmatpush1.msra.mxu0 0.0
    %507 = vmatprep.subr.mxu0 0.0
    %508 = vmatpush1.msra.mxu0 0.0
    %509 = vmatprep.subr.mxu0 0.0
    %510 = vmatpush1.msra.mxu0 0.0
    %511 = vmatprep.subr.mxu0 0.0
    %512 = vmatpush1.msra.mxu0 0.0
    %513 = vmatprep.subr.mxu0 0.0
    %514 = vmatpush1.msra.mxu0 0.0
    %515 = vmatprep.subr.mxu0 0.0
    %516 = vmatpush1.msra.mxu0 0.0
    %517 = vmatprep.subr.mxu0 0.0
    %518 = vmatpush1.msra.mxu0 0.0
    %519 = vmatprep.subr.mxu0 0.0
    %520 = vmatpush1.msra.mxu0 0.0
    %521 = vmatprep.subr.mxu0 0.0
    %522 = vmatpush1.msra.mxu0 0.0
    %523 = vmatprep.mubr.f32.mxu0 0.0
    %524 = vmatmul.mubr.f32.gmra.mrb[0].mxu0 %v457
    %v525 = vpop.f32.mrb[0].mxu0
    %v526 = vadd.f32 0.0, %v525
    %v527 = vpop.f32.mrb[0].mxu0
    %528 = vdwg.mxu0
    %vm529 = vcmask 64512
    %v530 = vsel %vm529, %v12, 0
    %532 = vmatprep.subr.mxu0 0.0
    %533 = vmatpush1.msra.mxu0 %v451
    %534 = vmatprep.subr.mxu0 0.0
    %535 = vmatpush1.msra.mxu0 0.0
    %536 = vmatprep.subr.mxu0 0.0
    %537 = vmatpush1.msra.mxu0 0.0
    %538 = vmatprep.subr.mxu0 0.0
    %539 = vmatpush1.msra.mxu0 0.0
    %540 = vmatprep.subr.mxu0 0.0
    %541 = vmatpush1.msra.mxu0 0.0
    %542 = vmatprep.subr.mxu0 0.0
    %543 = vmatpush1.msra.mxu0 0.0
    %544 = vmatprep.subr.mxu0 0.0
    %545 = vmatpush1.msra.mxu0 0.0
    %546 = vmatprep.subr.mxu0 0.0
    %547 = vmatpush1.msra.mxu0 0.0
    %548 = vmatprep.subr.mxu0 0.0
    %549 = vmatpush1.msra.mxu0 0.0
    %550 = vmatprep.subr.mxu0 0.0
    %551 = vmatpush1.msra.mxu0 0.0
    %552 = vmatprep.subr.mxu0 0.0
    %553 = vmatpush1.msra.mxu0 0.0
    %554 = vmatprep.subr.mxu0 0.0
    %555 = vmatpush1.msra.mxu0 0.0
    %556 = vmatprep.subr.mxu0 0.0
    %557 = vmatpush1.msra.mxu0 0.0
    %558 = vmatprep.subr.mxu0 0.0
    %559 = vmatpush1.msra.mxu0 0.0
    %560 = vmatprep.subr.mxu0 0.0
    %561 = vmatpush1.msra.mxu0 0.0
    %562 = vmatprep.subr.mxu0 0.0
    %563 = vmatpush1.msra.mxu0 0.0
    %564 = vmatprep.subr.mxu0 0.0
    %565 = vmatpush1.msra.mxu0 0.0
    %566 = vmatprep.subr.mxu0 0.0
    %567 = vmatpush1.msra.mxu0 0.0
    %568 = vmatprep.subr.mxu0 0.0
    %569 = vmatpush1.msra.mxu0 0.0
    %570 = vmatprep.subr.mxu0 0.0
    %571 = vmatpush1.msra.mxu0 0.0
    %572 = vmatprep.subr.mxu0 0.0
    %573 = vmatpush1.msra.mxu0 0.0
    %574 = vmatprep.subr.mxu0 0.0
    %575 = vmatpush1.msra.mxu0 0.0
    %576 = vmatprep.subr.mxu0 0.0
    %577 = vmatpush1.msra.mxu0 0.0
    %578 = vmatprep.subr.mxu0 0.0
    %579 = vmatpush1.msra.mxu0 0.0
    %580 = vmatprep.subr.mxu0 0.0
    %581 = vmatpush1.msra.mxu0 0.0
    %582 = vmatprep.subr.mxu0 0.0
    %583 = vmatpush1.msra.mxu0 0.0
    %584 = vmatprep.subr.mxu0 0.0
    %585 = vmatpush1.msra.mxu0 0.0
    %586 = vmatprep.subr.mxu0 0.0
    %587 = vmatpush1.msra.mxu0 0.0
    %588 = vmatprep.subr.mxu0 0.0
    %589 = vmatpush1.msra.mxu0 0.0
    %590 = vmatprep.subr.mxu0 0.0
    %591 = vmatpush1.msra.mxu0 0.0
    %592 = vmatprep.subr.mxu0 0.0
    %593 = vmatpush1.msra.mxu0 0.0
    %594 = vmatprep.subr.mxu0 0.0
    %595 = vmatpush1.msra.mxu0 0.0
    %596 = vmatprep.mubr.f32.mxu0 0.0
    %597 = vmatmul.mubr.f32.gmra.mrb[0].mxu0 %v530
    %v598 = vpop.f32.mrb[0].mxu0
    %v599 = vadd.f32 %v526, %v598
    %v600 = vpop.f32.mrb[0].mxu0
    %601 = vdwg.mxu0
    %v602 = vld [vmem:[%s1 + $0xb8] sm:$0xf]
    %603 = vrot.lane.b32.xlu0 %v12, 104
    %v604 = vpop.permute.xlu0 %603
    %vm605 = vcmask 31744
    %v606 = vsel %vm605, %v604, 0
    %vm608 = vcmask 1043456
    %v610 = vsel %vm608, %v602, 0
    %612 = vmatprep.subr.mxu0 0.0
    %613 = vmatpush1.msra.mxu0 %v610
    %614 = vmatprep.subr.mxu0 0.0
    %615 = vmatpush1.msra.mxu0 0.0
    %616 = vmatprep.subr.mxu0 0.0
    %617 = vmatpush1.msra.mxu0 0.0
    %618 = vmatprep.subr.mxu0 0.0
    %619 = vmatpush1.msra.mxu0 0.0
    %620 = vmatprep.subr.mxu0 0.0
    %621 = vmatpush1.msra.mxu0 0.0
    %622 = vmatprep.subr.mxu0 0.0
    %623 = vmatpush1.msra.mxu0 0.0
    %624 = vmatprep.subr.mxu0 0.0
    %625 = vmatpush1.msra.mxu0 0.0
    %626 = vmatprep.subr.mxu0 0.0
    %627 = vmatpush1.msra.mxu0 0.0
    %628 = vmatprep.subr.mxu0 0.0
    %629 = vmatpush1.msra.mxu0 0.0
    %630 = vmatprep.subr.mxu0 0.0
    %631 = vmatpush1.msra.mxu0 0.0
    %632 = vmatprep.subr.mxu0 0.0
    %633 = vmatpush1.msra.mxu0 0.0
    %634 = vmatprep.subr.mxu0 0.0
    %635 = vmatpush1.msra.mxu0 0.0
    %636 = vmatprep.subr.mxu0 0.0
    %637 = vmatpush1.msra.mxu0 0.0
    %638 = vmatprep.subr.mxu0 0.0
    %639 = vmatpush1.msra.mxu0 0.0
    %640 = vmatprep.subr.mxu0 0.0
    %641 = vmatpush1.msra.mxu0 0.0
    %642 = vmatprep.subr.mxu0 0.0
    %643 = vmatpush1.msra.mxu0 0.0
    %644 = vmatprep.subr.mxu0 0.0
    %645 = vmatpush1.msra.mxu0 0.0
    %646 = vmatprep.subr.mxu0 0.0
    %647 = vmatpush1.msra.mxu0 0.0
    %648 = vmatprep.subr.mxu0 0.0
    %649 = vmatpush1.msra.mxu0 0.0
    %650 = vmatprep.subr.mxu0 0.0
    %651 = vmatpush1.msra.mxu0 0.0
    %652 = vmatprep.subr.mxu0 0.0
    %653 = vmatpush1.msra.mxu0 0.0
    %654 = vmatprep.subr.mxu0 0.0
    %655 = vmatpush1.msra.mxu0 0.0
    %656 = vmatprep.subr.mxu0 0.0
    %657 = vmatpush1.msra.mxu0 0.0
    %658 = vmatprep.subr.mxu0 0.0
    %659 = vmatpush1.msra.mxu0 0.0
    %660 = vmatprep.subr.mxu0 0.0
    %661 = vmatpush1.msra.mxu0 0.0
    %662 = vmatprep.subr.mxu0 0.0
    %663 = vmatpush1.msra.mxu0 0.0
    %664 = vmatprep.subr.mxu0 0.0
    %665 = vmatpush1.msra.mxu0 0.0
    %666 = vmatprep.subr.mxu0 0.0
    %667 = vmatpush1.msra.mxu0 0.0
    %668 = vmatprep.subr.mxu0 0.0
    %669 = vmatpush1.msra.mxu0 0.0
    %670 = vmatprep.subr.mxu0 0.0
    %671 = vmatpush1.msra.mxu0 0.0
    %672 = vmatprep.subr.mxu0 0.0
    %673 = vmatpush1.msra.mxu0 0.0
    %674 = vmatprep.subr.mxu0 0.0
    %675 = vmatpush1.msra.mxu0 0.0
    %676 = vmatprep.mubr.f32.mxu0 0.0
    %677 = vmatmul.mubr.f32.gmra.mrb[0].mxu0 %v606
    %v678 = vpop.f32.mrb[0].mxu0
    %v679 = vadd.f32 0.0, %v678
    %v680 = vpop.f32.mrb[0].mxu0
    %681 = vdwg.mxu0
    %v682 = vadd.f32 %v599, %v679
    %v683 = vld [vmem:[%s1 + $0xc0] sm:$0xff]
    %v685 = vsel %vm529, %v450, 0
    %687 = vmatprep.subr.mxu0 0.0
    %688 = vmatpush1.msra.mxu0 %v683
    %689 = vmatprep.subr.mxu0 0.0
    %690 = vmatpush1.msra.mxu0 0.0
    %691 = vmatprep.subr.mxu0 0.0
    %692 = vmatpush1.msra.mxu0 0.0
    %693 = vmatprep.subr.mxu0 0.0
    %694 = vmatpush1.msra.mxu0 0.0
    %695 = vmatprep.subr.mxu0 0.0
    %696 = vmatpush1.msra.mxu0 0.0
    %697 = vmatprep.subr.mxu0 0.0
    %698 = vmatpush1.msra.mxu0 0.0
    %699 = vmatprep.subr.mxu0 0.0
    %700 = vmatpush1.msra.mxu0 0.0
    %701 = vmatprep.subr.mxu0 0.0
    %702 = vmatpush1.msra.mxu0 0.0
    %703 = vmatprep.subr.mxu0 0.0
    %704 = vmatpush1.msra.mxu0 0.0
    %705 = vmatprep.subr.mxu0 0.0
    %706 = vmatpush1.msra.mxu0 0.0
    %707 = vmatprep.subr.mxu0 0.0
    %708 = vmatpush1.msra.mxu0 0.0
    %709 = vmatprep.subr.mxu0 0.0
    %710 = vmatpush1.msra.mxu0 0.0
    %711 = vmatprep.subr.mxu0 0.0
    %712 = vmatpush1.msra.mxu0 0.0
    %713 = vmatprep.subr.mxu0 0.0
    %714 = vmatpush1.msra.mxu0 0.0
    %715 = vmatprep.subr.mxu0 0.0
    %716 = vmatpush1.msra.mxu0 0.0
    %717 = vmatprep.subr.mxu0 0.0
    %718 = vmatpush1.msra.mxu0 0.0
    %719 = vmatprep.subr.mxu0 0.0
    %720 = vmatpush1.msra.mxu0 0.0
    %721 = vmatprep.subr.mxu0 0.0
    %722 = vmatpush1.msra.mxu0 0.0
    %723 = vmatprep.subr.mxu0 0.0
    %724 = vmatpush1.msra.mxu0 0.0
    %725 = vmatprep.subr.mxu0 0.0
    %726 = vmatpush1.msra.mxu0 0.0
    %727 = vmatprep.subr.mxu0 0.0
    %728 = vmatpush1.msra.mxu0 0.0
    %729 = vmatprep.subr.mxu0 0.0
    %730 = vmatpush1.msra.mxu0 0.0
    %731 = vmatprep.subr.mxu0 0.0
    %732 = vmatpush1.msra.mxu0 0.0
    %733 = vmatprep.subr.mxu0 0.0
    %734 = vmatpush1.msra.mxu0 0.0
    %735 = vmatprep.subr.mxu0 0.0
    %736 = vmatpush1.msra.mxu0 0.0
    %737 = vmatprep.subr.mxu0 0.0
    %738 = vmatpush1.msra.mxu0 0.0
    %739 = vmatprep.subr.mxu0 0.0
    %740 = vmatpush1.msra.mxu0 0.0
    %741 = vmatprep.subr.mxu0 0.0
    %742 = vmatpush1.msra.mxu0 0.0
    %743 = vmatprep.subr.mxu0 0.0
    %744 = vmatpush1.msra.mxu0 0.0
    %745 = vmatprep.subr.mxu0 0.0
    %746 = vmatpush1.msra.mxu0 0.0
    %747 = vmatprep.subr.mxu0 0.0
    %748 = vmatpush1.msra.mxu0 0.0
    %749 = vmatprep.subr.mxu0 0.0
    %750 = vmatpush1.msra.mxu0 0.0
    %751 = vmatprep.mubr.f32.mxu0 0.0
    %752 = vmatmul.mubr.f32.gmra.mrb[0].mxu0 %v685
    %v753 = vpop.f32.mrb[0].mxu0
    %v754 = vadd.f32 0.0, %v753
    %v755 = vpop.f32.mrb[0].mxu0
    %756 = vdwg.mxu0
    %v757 = vadd.f32 %v682, %v754
    %v758 = vld [vmem:[%s1 + $0xc8] sm:$0x1]
    %v759 = vlaneseq
    %v760 = vshrl.u32 %v759, 7
    %v761 = vsub.s32 0, %v760
    %v762 = vrot.slane %v758, %v761
    %v763 = vadd.f32 %v757, %v762
    %v764 = vmax.f32 %v763, 0.0
    %v765 = vmin.f32 %v763, 0.0
    %v766 = vmul.f32 %v765, 1.442695
    %v767 = vpow.pop %v766
    %v768 = vadd.f32 %v764, %v767
    %v769 = vsub.f32 %v768, 1.0
    %v770 = vld [vmem:[%s1 + $0xd0] sm:$0xff]
    %v771 = vld [vmem:[%s1 + $0xd8] sm:$0xff]
    %v772 = vld [vmem:[%s1 + $0xe0] sm:$0xff]
    %v773 = vld [vmem:[%s1 + $0xe8] sm:$0xff]
    %v774 = vld [vmem:[%s1 + $0xf0] sm:$0x1]
    %v775 = vlaneseq
    %v776 = vshrl.u32 %v775, 7
    %v777 = vsub.s32 0, %v776
    %v778 = vrot.slane %v774, %v777
    %v780 = vsel %vm111, %v769, 0
    %782 = vmatprep.subr.mxu0 0.0
    %783 = vmatpush1.msra.mxu0 %v770
    %784 = vmatprep.subr.mxu0 0.0
    %785 = vmatpush1.msra.mxu0 %v771
    %786 = vmatprep.subr.mxu0 0.0
    %787 = vmatpush1.msra.mxu0 %v772
    %788 = vmatprep.subr.mxu0 0.0
    %789 = vmatpush1.msra.mxu0 %v773
    %790 = vmatprep.subr.mxu0 0.0
    %791 = vmatpush1.msra.mxu0 0.0
    %792 = vmatprep.subr.mxu0 0.0
    %793 = vmatpush1.msra.mxu0 0.0
    %794 = vmatprep.subr.mxu0 0.0
    %795 = vmatpush1.msra.mxu0 0.0
    %796 = vmatprep.subr.mxu0 0.0
    %797 = vmatpush1.msra.mxu0 0.0
    %798 = vmatprep.subr.mxu0 0.0
    %799 = vmatpush1.msra.mxu0 0.0
    %800 = vmatprep.subr.mxu0 0.0
    %801 = vmatpush1.msra.mxu0 0.0
    %802 = vmatprep.subr.mxu0 0.0
    %803 = vmatpush1.msra.mxu0 0.0
    %804 = vmatprep.subr.mxu0 0.0
    %805 = vmatpush1.msra.mxu0 0.0
    %806 = vmatprep.subr.mxu0 0.0
    %807 = vmatpush1.msra.mxu0 0.0
    %808 = vmatprep.subr.mxu0 0.0
    %809 = vmatpush1.msra.mxu0 0.0
    %810 = vmatprep.subr.mxu0 0.0
    %811 = vmatpush1.msra.mxu0 0.0
    %812 = vmatprep.subr.mxu0 0.0
    %813 = vmatpush1.msra.mxu0 0.0
    %814 = vmatprep.subr.mxu0 0.0
    %815 = vmatpush1.msra.mxu0 0.0
    %816 = vmatprep.subr.mxu0 0.0
    %817 = vmatpush1.msra.mxu0 0.0
    %818 = vmatprep.subr.mxu0 0.0
    %819 = vmatpush1.msra.mxu0 0.0
    %820 = vmatprep.subr.mxu0 0.0
    %821 = vmatpush1.msra.mxu0 0.0
    %822 = vmatprep.subr.mxu0 0.0
    %823 = vmatpush1.msra.mxu0 0.0
    %824 = vmatprep.subr.mxu0 0.0
    %825 = vmatpush1.msra.mxu0 0.0
    %826 = vmatprep.subr.mxu0 0.0
    %827 = vmatpush1.msra.mxu0 0.0
    %828 = vmatprep.subr.mxu0 0.0
    %829 = vmatpush1.msra.mxu0 0.0
    %830 = vmatprep.subr.mxu0 0.0
    %831 = vmatpush1.msra.mxu0 0.0
    %832 = vmatprep.subr.mxu0 0.0
    %833 = vmatpush1.msra.mxu0 0.0
    %834 = vmatprep.subr.mxu0 0.0
    %835 = vmatpush1.msra.mxu0 0.0
    %836 = vmatprep.subr.mxu0 0.0
    %837 = vmatpush1.msra.mxu0 0.0
    %838 = vmatprep.subr.mxu0 0.0
    %839 = vmatpush1.msra.mxu0 0.0
    %840 = vmatprep.subr.mxu0 0.0
    %841 = vmatpush1.msra.mxu0 0.0
    %842 = vmatprep.subr.mxu0 0.0
    %843 = vmatpush1.msra.mxu0 0.0
    %844 = vmatprep.subr.mxu0 0.0
    %845 = vmatpush1.msra.mxu0 0.0
    %846 = vmatprep.mubr.f32.mxu0 0.0
    %847 = vmatmul.mubr.f32.gmra.mrb[0].mxu0 %v780
    %v848 = vpop.f32.mrb[0].mxu0
    %v849 = vadd.f32 %v778, %v848
    %v850 = vpop.f32.mrb[0].mxu0
    %851 = vdwg.mxu0
    %v852 = vmax.f32 %v849, 0.0
    %v853 = vmin.f32 %v849, 0.0
    %v854 = vmul.f32 %v853, 1.442695
    %v855 = vpow.pop %v854
    %v856 = vadd.f32 %v852, %v855
    %v857 = vsub.f32 %v856, 1.0
    %v858 = vld [vmem:[%s1 + $0xf8] sm:$0xff]
    %v859 = vld [vmem:[%s1 + $0x100] sm:$0xff]
    %v860 = vld [vmem:[%s1 + $0x108] sm:$0xff]
    %v861 = vld [vmem:[%s1 + $0x110] sm:$0xff]
    %v862 = vld [vmem:[%s1 + $0x118] sm:$0x1]
    %v863 = vlaneseq
    %v864 = vshrl.u32 %v863, 7
    %v865 = vsub.s32 0, %v864
    %v866 = vrot.slane %v862, %v865
    %v868 = vsel %vm111, %v857, 0
    %870 = vmatprep.subr.mxu0 0.0
    %871 = vmatpush1.msra.mxu0 %v858
    %872 = vmatprep.subr.mxu0 0.0
    %873 = vmatpush1.msra.mxu0 %v859
    %874 = vmatprep.subr.mxu0 0.0
    %875 = vmatpush1.msra.mxu0 %v860
    %876 = vmatprep.subr.mxu0 0.0
    %877 = vmatpush1.msra.mxu0 %v861
    %878 = vmatprep.subr.mxu0 0.0
    %879 = vmatpush1.msra.mxu0 0.0
    %880 = vmatprep.subr.mxu0 0.0
    %881 = vmatpush1.msra.mxu0 0.0
    %882 = vmatprep.subr.mxu0 0.0
    %883 = vmatpush1.msra.mxu0 0.0
    %884 = vmatprep.subr.mxu0 0.0
    %885 = vmatpush1.msra.mxu0 0.0
    %886 = vmatprep.subr.mxu0 0.0
    %887 = vmatpush1.msra.mxu0 0.0
    %888 = vmatprep.subr.mxu0 0.0
    %889 = vmatpush1.msra.mxu0 0.0
    %890 = vmatprep.subr.mxu0 0.0
    %891 = vmatpush1.msra.mxu0 0.0
    %892 = vmatprep.subr.mxu0 0.0
    %893 = vmatpush1.msra.mxu0 0.0
    %894 = vmatprep.subr.mxu0 0.0
    %895 = vmatpush1.msra.mxu0 0.0
    %896 = vmatprep.subr.mxu0 0.0
    %897 = vmatpush1.msra.mxu0 0.0
    %898 = vmatprep.subr.mxu0 0.0
    %899 = vmatpush1.msra.mxu0 0.0
    %900 = vmatprep.subr.mxu0 0.0
    %901 = vmatpush1.msra.mxu0 0.0
    %902 = vmatprep.subr.mxu0 0.0
    %903 = vmatpush1.msra.mxu0 0.0
    %904 = vmatprep.subr.mxu0 0.0
    %905 = vmatpush1.msra.mxu0 0.0
    %906 = vmatprep.subr.mxu0 0.0
    %907 = vmatpush1.msra.mxu0 0.0
    %908 = vmatprep.subr.mxu0 0.0
    %909 = vmatpush1.msra.mxu0 0.0
    %910 = vmatprep.subr.mxu0 0.0
    %911 = vmatpush1.msra.mxu0 0.0
    %912 = vmatprep.subr.mxu0 0.0
    %913 = vmatpush1.msra.mxu0 0.0
    %914 = vmatprep.subr.mxu0 0.0
    %915 = vmatpush1.msra.mxu0 0.0
    %916 = vmatprep.subr.mxu0 0.0
    %917 = vmatpush1.msra.mxu0 0.0
    %918 = vmatprep.subr.mxu0 0.0
    %919 = vmatpush1.msra.mxu0 0.0
    %920 = vmatprep.subr.mxu0 0.0
    %921 = vmatpush1.msra.mxu0 0.0
    %922 = vmatprep.subr.mxu0 0.0
    %923 = vmatpush1.msra.mxu0 0.0
    %924 = vmatprep.subr.mxu0 0.0
    %925 = vmatpush1.msra.mxu0 0.0
    %926 = vmatprep.subr.mxu0 0.0
    %927 = vmatpush1.msra.mxu0 0.0
    %928 = vmatprep.subr.mxu0 0.0
    %929 = vmatpush1.msra.mxu0 0.0
    %930 = vmatprep.subr.mxu0 0.0
    %931 = vmatpush1.msra.mxu0 0.0
    %932 = vmatprep.subr.mxu0 0.0
    %933 = vmatpush1.msra.mxu0 0.0
    %934 = vmatprep.mubr.f32.mxu0 0.0
    %935 = vmatmul.mubr.f32.gmra.mrb[0].mxu0 %v868
    %v936 = vpop.f32.mrb[0].mxu0
    %v937 = vadd.f32 %v866, %v936
    %v938 = vpop.f32.mrb[0].mxu0
    %939 = vdwg.mxu0
    %v940 = vmax.f32 %v937, 0.0
    %v941 = vmin.f32 %v937, 0.0
    %v942 = vmul.f32 %v941, 1.442695
    %v943 = vpow.pop %v942
    %v944 = vadd.f32 %v940, %v943
    %v945 = vsub.f32 %v944, 1.0
    %v946 = vld [vmem:[%s1 + $0x120] sm:$0xff]
    %v947 = vld [vmem:[%s1 + $0x128] sm:$0xff]
    %v948 = vld [vmem:[%s1 + $0x130] sm:$0xff]
    %v949 = vld [vmem:[%s1 + $0x138] sm:$0xff]
    %v950 = vld [vmem:[%s1 + $0x140] sm:$0x1]
    %v951 = vlaneseq
    %v952 = vshrl.u32 %v951, 7
    %v953 = vsub.s32 0, %v952
    %v954 = vrot.slane %v950, %v953
    %v956 = vsel %vm111, %v945, 0
    %958 = vmatprep.subr.mxu0 0.0
    %959 = vmatpush1.msra.mxu0 %v946
    %960 = vmatprep.subr.mxu0 0.0
    %961 = vmatpush1.msra.mxu0 %v947
    %962 = vmatprep.subr.mxu0 0.0
    %963 = vmatpush1.msra.mxu0 %v948
    %964 = vmatprep.subr.mxu0 0.0
    %965 = vmatpush1.msra.mxu0 %v949
    %966 = vmatprep.subr.mxu0 0.0
    %967 = vmatpush1.msra.mxu0 0.0
    %968 = vmatprep.subr.mxu0 0.0
    %969 = vmatpush1.msra.mxu0 0.0
    %970 = vmatprep.subr.mxu0 0.0
    %971 = vmatpush1.msra.mxu0 0.0
    %972 = vmatprep.subr.mxu0 0.0
    %973 = vmatpush1.msra.mxu0 0.0
    %974 = vmatprep.subr.mxu0 0.0
    %975 = vmatpush1.msra.mxu0 0.0
    %976 = vmatprep.subr.mxu0 0.0
    %977 = vmatpush1.msra.mxu0 0.0
    %978 = vmatprep.subr.mxu0 0.0
    %979 = vmatpush1.msra.mxu0 0.0
    %980 = vmatprep.subr.mxu0 0.0
    %981 = vmatpush1.msra.mxu0 0.0
    %982 = vmatprep.subr.mxu0 0.0
    %983 = vmatpush1.msra.mxu0 0.0
    %984 = vmatprep.subr.mxu0 0.0
    %985 = vmatpush1.msra.mxu0 0.0
    %986 = vmatprep.subr.mxu0 0.0
    %987 = vmatpush1.msra.mxu0 0.0
    %988 = vmatprep.subr.mxu0 0.0
    %989 = vmatpush1.msra.mxu0 0.0
    %990 = vmatprep.subr.mxu0 0.0
    %991 = vmatpush1.msra.mxu0 0.0
    %992 = vmatprep.subr.mxu0 0.0
    %993 = vmatpush1.msra.mxu0 0.0
    %994 = vmatprep.subr.mxu0 0.0
    %995 = vmatpush1.msra.mxu0 0.0
    %996 = vmatprep.subr.mxu0 0.0
    %997 = vmatpush1.msra.mxu0 0.0
    %998 = vmatprep.subr.mxu0 0.0
    %999 = vmatpush1.msra.mxu0 0.0
    %1000 = vmatprep.subr.mxu0 0.0
    %1001 = vmatpush1.msra.mxu0 0.0
    %1002 = vmatprep.subr.mxu0 0.0
    %1003 = vmatpush1.msra.mxu0 0.0
    %1004 = vmatprep.subr.mxu0 0.0
    %1005 = vmatpush1.msra.mxu0 0.0
    %1006 = vmatprep.subr.mxu0 0.0
    %1007 = vmatpush1.msra.mxu0 0.0
    %1008 = vmatprep.subr.mxu0 0.0
    %1009 = vmatpush1.msra.mxu0 0.0
    %1010 = vmatprep.subr.mxu0 0.0
    %1011 = vmatpush1.msra.mxu0 0.0
    %1012 = vmatprep.subr.mxu0 0.0
    %1013 = vmatpush1.msra.mxu0 0.0
    %1014 = vmatprep.subr.mxu0 0.0
    %1015 = vmatpush1.msra.mxu0 0.0
    %1016 = vmatprep.subr.mxu0 0.0
    %1017 = vmatpush1.msra.mxu0 0.0
    %1018 = vmatprep.subr.mxu0 0.0
    %1019 = vmatpush1.msra.mxu0 0.0
    %1020 = vmatprep.subr.mxu0 0.0
    %1021 = vmatpush1.msra.mxu0 0.0
    %1022 = vmatprep.mubr.f32.mxu0 0.0
    %1023 = vmatmul.mubr.f32.gmra.mrb[0].mxu0 %v956
    %v1024 = vpop.f32.mrb[0].mxu0
    %v1025 = vadd.f32 %v954, %v1024
    %v1026 = vpop.f32.mrb[0].mxu0
    %1027 = vdwg.mxu0
    %1028 = vst.msk [vmem:[#allocation2] sm:$0xff] %vm529, %v1025
    // Predicated region
    $region10: #{actor_forward.1} parent=1 // pred_check
      _
    $region11: #{actor_forward.1} parent=1 // pred_check_branch
      %1030 = sbr.rel (0) target = $region13
    $region12: #{actor_forward.1} parent=1 // pred_region
      %s1032 = ssub.s32 128, 32
      %1033 = vsyncadd [#allocation3], %s1032
      %s1034 = sshll.u32 [#allocation2], 4
      %s1035 = int_to_ptr.vmem [resolvable:$true] %s1034
      %1040 = dma.vmem_to_hbm [thread:$0]  %s1035, 32, %s2, [#allocation3], 32, 32, 2
    $region13: #{actor_forward.1} parent=1 // pred_fallthru
      _
    // Predicated region
    $region14: #{actor_forward.1} parent=1 // pred_check
      _
    $region15: #{actor_forward.1} parent=1 // pred_check_branch
      %1042 = sbr.rel (0) target = $region17
    $region16: #{actor_forward.1} parent=1 // pred_region
      %1043 = dma.done [#allocation3], 128
    $region17: #{actor_forward.1} parent=1 // pred_fallthru
      _
    %1044 = vsyncpa [#allocation3], 1

</llo_original>
